<compile_context>
chip_gen: v7x
topology: tpu7x:2x2x1
jax: 0.10.0
libtpu: 0.0.40
codegen_flags: <defaults>
</compile_context>

<pallas_src>
import jax
import jax.numpy as jnp
from jax.experimental import pallas as pl
from jax.experimental.pallas import tpu as pltpu

EMB_DIM = 32
NUM_LAYER = 2
BN_EPS = 1e-5

PAD_E = 128   # padded emb dim (lane-dense)
PAD_H = 128   # padded 2*emb hidden dim (lane-dense)
PAD_A = 8     # padded edge-attr dim (7 -> 8)

_VMEM = pl.BlockSpec(memory_space=pltpu.MemorySpace.VMEM)
_PARAMS_PER_LAYER = 7  # we, be, w1a, w1b, b1, w2, b2


# ----------------------------------------------------------------------------
# Fused kernel: input embedding + NUM_LAYER GIN layers, all VMEM-resident.
# ----------------------------------------------------------------------------
def _gnn_fused_kernel(x_ref, A_ref, P_ref, deg_ref, w_in_ref, b_in_ref, *rest):
    *layer_refs, o_ref = rest

    # Layer 0 is input_layer=True: embed raw node features [N,1024] -> [N, PAD_E].
    h = (
        jnp.dot(x_ref[...], w_in_ref[...], preferred_element_type=jnp.float32)
        + b_in_ref[...]
    )

    A = A_ref[...]        # [N, N]   dense multi-edge count incl. self-loops
    P = P_ref[...]        # [N, 8]   S @ edge_attr (incl. self-loop one-hot), zero-padded col
    deg = deg_ref[...]    # [N, 1]   in-degree incl. self-loop

    for layer in range(NUM_LAYER):
        we, be, w1a, w1b, b1, w2, b2 = layer_refs[
            layer * _PARAMS_PER_LAYER:(layer + 1) * _PARAMS_PER_LAYER]

        # Neighbor aggregation (scatter-add by destination) expressed densely:
        #   aggr_x = A @ h
        #   aggr_e = S @ (eattr @ We + be) = P @ We + deg * be
        aggr_x = jnp.dot(A, h, preferred_element_type=jnp.float32)
        aggr_e = (
            jnp.dot(P, we[...], preferred_element_type=jnp.float32)
            + deg * be[...]
        )

        # MLP: Linear(2e,2e) [BN folded in] -> ReLU -> Linear(2e,e).
        # W1 is pre-split along its input dim so concat([aggr_x, aggr_e]) @ W1
        # == aggr_x @ W1a + aggr_e @ W1b.
        h1 = (
            jnp.dot(aggr_x, w1a[...], preferred_element_type=jnp.float32)
            + jnp.dot(aggr_e, w1b[...], preferred_element_type=jnp.float32)
            + b1[...]
        )
        h1 = jnp.maximum(h1, 0.0)

        h = jnp.dot(h1, w2[...], preferred_element_type=jnp.float32) + b2[...]
        if layer != NUM_LAYER - 1:   # F.relu for all but the last GNN layer
            h = jnp.maximum(h, 0.0)
        # F.dropout with drop_ratio=0 is the identity.

    o_ref[...] = h


# ----------------------------------------------------------------------------
# Wrapper
# ----------------------------------------------------------------------------
def gnn_forward(x_raw, A, P, deg, packed):
    """Matches GNN.forward with JK='last' (inference, drop_ratio=0)."""
    n = x_raw.shape[0]
    flat = [packed["w_in"], packed["b_in"]]
    for lp in packed["layers"]:
        flat.extend(lp)
    out_pad = pl.pallas_call(
        _gnn_fused_kernel,
        out_shape=jax.ShapeDtypeStruct((n, PAD_E), jnp.float32),
        in_specs=[_VMEM] * (4 + len(flat)),
        out_specs=_VMEM,
    )(x_raw, A, P, deg, *flat)
    return out_pad[:, :EMB_DIM]


def build_graph_tensors(n, edge_index, edge_attr):
    """Static per-graph glue: add_self_loops + dense aggregation operands."""
    src = jnp.concatenate([edge_index[0], jnp.arange(n)])
    dst = jnp.concatenate([edge_index[1], jnp.arange(n)])
    self_loop_attr = jnp.zeros((n, 7), jnp.float32).at[:, 6].set(1.0)
    eattr_full = jnp.concatenate([edge_attr, self_loop_attr], axis=0)      # [E+N, 7]

    A = jnp.zeros((n, n), jnp.float32).at[dst, src].add(1.0)               # [N, N]
    P_raw = jnp.zeros((n, 7), jnp.float32).at[dst].add(eattr_full)         # S @ eattr
    P = jnp.zeros((n, PAD_A), jnp.float32).at[:, :7].set(P_raw)            # [N, 8]
    deg = jnp.zeros((n,), jnp.float32).at[dst].add(1.0).reshape(n, 1)      # [N, 1]
    return A, P, deg


# ----------------------------------------------------------------------------
# Parameters: raw (torch-equivalent) init + packing (BN fold, W1 split, lane pad)
# ----------------------------------------------------------------------------
def init_raw_params(key):
    emb = EMB_DIM

    def lin(k, fan_in, fan_out):
        kw, kb = jax.random.split(k)
        s = 1.0 / jnp.sqrt(jnp.float32(fan_in))
        w = jax.random.uniform(kw, (fan_in, fan_out), jnp.float32, -s, s)
        b = jax.random.uniform(kb, (1, fan_out), jnp.float32, -s, s)
        return w, b

    keys = jax.random.split(key, NUM_LAYER + 1)
    w_in, b_in = lin(keys[0], 1024, emb)           # input_node_embeddings (layer 0 only)

    layers = []
    for l in range(NUM_LAYER):
        k_e, k_1, k_2 = jax.random.split(keys[l + 1], 3)
        we, be = lin(k_e, 7, emb)                  # edge_encoder
        w1, b1 = lin(k_1, 2 * emb, 2 * emb)        # mlp[0]
        w2, b2 = lin(k_2, 2 * emb, emb)            # mlp[3]
        gamma = jnp.ones((1, 2 * emb), jnp.float32)    # BatchNorm1d affine
        beta = jnp.zeros((1, 2 * emb), jnp.float32)
        mean = jnp.zeros((1, 2 * emb), jnp.float32)    # running stats at init
        var = jnp.ones((1, 2 * emb), jnp.float32)
        layers.append(dict(we=we, be=be, w1=w1, b1=b1, gamma=gamma, beta=beta,
                           mean=mean, var=var, w2=w2, b2=b2))
    return {"w_in": w_in, "b_in": b_in, "layers": layers}


def pack_params(raw):
    emb = EMB_DIM

    def pad2(a, rows, cols):
        return jnp.zeros((rows, cols), jnp.float32).at[:a.shape[0], :a.shape[1]].set(a)

    packed = {"w_in": pad2(raw["w_in"], 1024, PAD_E),
              "b_in": pad2(raw["b_in"], 1, PAD_E),
              "layers": []}
    for lp in raw["layers"]:
        # Fold eval-mode BatchNorm into the preceding Linear.
        scale = lp["gamma"] * jax.lax.rsqrt(lp["var"] + BN_EPS)            # [1, 2e]
        w1_f = lp["w1"] * scale                                            # col-scale
        b1_f = (lp["b1"] - lp["mean"]) * scale + lp["beta"]
        packed["layers"].append((
            pad2(lp["we"], PAD_A, PAD_E),
            pad2(lp["be"], 1, PAD_E),
            pad2(w1_f[:emb, :], PAD_E, PAD_H),     # W1 split: aggr_x half
            pad2(w1_f[emb:, :], PAD_E, PAD_H),     # W1 split: aggr_e half
            pad2(b1_f, 1, PAD_H),
            pad2(lp["w2"], PAD_H, PAD_E),
            pad2(lp["b2"], 1, PAD_E),
        ))
    return packed


# ----------------------------------------------------------------------------
# Pure-JAX reference (literal translation of the torch forward, for validation)
# ----------------------------------------------------------------------------
def reference_forward(x, edge_index, edge_attr, raw):
    n = x.shape[0]
    src = jnp.concatenate([edge_index[0], jnp.arange(n)])
    dst = jnp.concatenate([edge_index[1], jnp.arange(n)])
    self_loop_attr = jnp.zeros((n, 7), jnp.float32).at[:, 6].set(1.0)
    eattr = jnp.concatenate([edge_attr, self_loop_attr], axis=0)

    h = x @ raw["w_in"] + raw["b_in"]
    for l, lp in enumerate(raw["layers"]):
        e = eattr @ lp["we"] + lp["be"]
        msg = jnp.concatenate([h[src], e], axis=1)                   # cat([x_j, edge_attr])
        aggr = jnp.zeros((n, msg.shape[1]), jnp.float32).at[dst].add(msg)
        h1 = aggr @ lp["w1"] + lp["b1"]
        h1 = (h1 - lp["mean"]) * jax.lax.rsqrt(lp["var"] + BN_EPS) * lp["gamma"] + lp["beta"]
        h1 = jnp.maximum(h1, 0.0)
        h = h1 @ lp["w2"] + lp["b2"]
        if l != NUM_LAYER - 1:
            h = jnp.maximum(h, 0.0)
    return h  # JK == 'last'


# ----------------------------------------------------------------------------
# Main
# ----------------------------------------------------------------------------
if __name__ == "__main__":
    key = jax.random.PRNGKey(0)
    N, E = 16, 24  # nodes, edges
    k_x, k_ei, k_ea, k_p = jax.random.split(key, 4)

    x = jax.random.normal(k_x, (N, 1024), jnp.float32)
    edge_index = jax.random.randint(k_ei, (2, E), 0, N)
    edge_attr = jax.nn.one_hot(
        jax.random.randint(k_ea, (E,), 0, 6), 7, dtype=jnp.float32)

    A, P, deg = build_graph_tensors(N, edge_index, edge_attr)
    raw = init_raw_params(k_p)
    packed = pack_params(raw)

    out = gnn_forward(x, A, P, deg, packed)
    out = jax.block_until_ready(out)
    assert out.shape == (N, EMB_DIM) and out.dtype == jnp.float32

    ref = jax.block_until_ready(reference_forward(x, edge_index, edge_attr, raw))
    err = float(jnp.max(jnp.abs(out - ref)))
    assert err < 5e-2, f"mismatch vs reference: max abs err = {err}"

    print("KERNEL_OK")
</pallas_src>

<mosaic_0001>
module attributes {stable_mosaic.version = 11 : i64} {
  func.func @_gnn_fused_kernel(%arg0: memref<16x1024xf32, #tpu.memory_space<vmem>>, %arg1: memref<16x16xf32, #tpu.memory_space<vmem>>, %arg2: memref<16x8xf32, #tpu.memory_space<vmem>>, %arg3: memref<16x1xf32, #tpu.memory_space<vmem>>, %arg4: memref<1024x128xf32, #tpu.memory_space<vmem>>, %arg5: memref<1x128xf32, #tpu.memory_space<vmem>>, %arg6: memref<8x128xf32, #tpu.memory_space<vmem>>, %arg7: memref<1x128xf32, #tpu.memory_space<vmem>>, %arg8: memref<128x128xf32, #tpu.memory_space<vmem>>, %arg9: memref<128x128xf32, #tpu.memory_space<vmem>>, %arg10: memref<1x128xf32, #tpu.memory_space<vmem>>, %arg11: memref<128x128xf32, #tpu.memory_space<vmem>>, %arg12: memref<1x128xf32, #tpu.memory_space<vmem>>, %arg13: memref<8x128xf32, #tpu.memory_space<vmem>>, %arg14: memref<1x128xf32, #tpu.memory_space<vmem>>, %arg15: memref<128x128xf32, #tpu.memory_space<vmem>>, %arg16: memref<128x128xf32, #tpu.memory_space<vmem>>, %arg17: memref<1x128xf32, #tpu.memory_space<vmem>>, %arg18: memref<128x128xf32, #tpu.memory_space<vmem>>, %arg19: memref<1x128xf32, #tpu.memory_space<vmem>>, %arg20: memref<16x128xf32, #tpu.memory_space<vmem>>) attributes {dimension_semantics = [], scalar_prefetch = 0 : i64, scratch_operands = 0 : i64, tpu.core_type = #tpu.core_type<tc>} {
    %c0 = arith.constant 0 : index
    %c0_0 = arith.constant 0 : index
    %0 = vector.load %arg0[%c0, %c0_0] : memref<16x1024xf32, #tpu.memory_space<vmem>>, vector<16x1024xf32>
    %c0_1 = arith.constant 0 : index
    %c0_2 = arith.constant 0 : index
    %1 = vector.load %arg4[%c0_1, %c0_2] : memref<1024x128xf32, #tpu.memory_space<vmem>>, vector<1024x128xf32>
    %cst = arith.constant dense<0.000000e+00> : vector<16x128xf32>
    %2 = tpu.matmul %0, %1, %cst {dimension_numbers = #tpu.dot_dimension_numbers<[1], [0], [0], [1], [0, 0, 1, 1], [], []>} : vector<16x1024xf32>, vector<1024x128xf32>, vector<16x128xf32> -> vector<16x128xf32>
    %c0_3 = arith.constant 0 : index
    %c0_4 = arith.constant 0 : index
    %3 = vector.load %arg5[%c0_3, %c0_4] : memref<1x128xf32, #tpu.memory_space<vmem>>, vector<1x128xf32>
    %4 = vector.broadcast %3 : vector<1x128xf32> to vector<16x128xf32>
    %5 = arith.addf %2, %4 : vector<16x128xf32>
    %c0_5 = arith.constant 0 : index
    %c0_6 = arith.constant 0 : index
    %6 = vector.load %arg1[%c0_5, %c0_6] : memref<16x16xf32, #tpu.memory_space<vmem>>, vector<16x16xf32>
    %c0_7 = arith.constant 0 : index
    %c0_8 = arith.constant 0 : index
    %7 = vector.load %arg2[%c0_7, %c0_8] : memref<16x8xf32, #tpu.memory_space<vmem>>, vector<16x8xf32>
    %c0_9 = arith.constant 0 : index
    %c0_10 = arith.constant 0 : index
    %8 = vector.load %arg3[%c0_9, %c0_10] : memref<16x1xf32, #tpu.memory_space<vmem>>, vector<16x1xf32>
    %cst_11 = arith.constant dense<0.000000e+00> : vector<16x128xf32>
    %9 = tpu.matmul %6, %5, %cst_11 {dimension_numbers = #tpu.dot_dimension_numbers<[1], [0], [0], [1], [0, 0, 1, 1], [], []>} : vector<16x16xf32>, vector<16x128xf32>, vector<16x128xf32> -> vector<16x128xf32>
    %c0_12 = arith.constant 0 : index
    %c0_13 = arith.constant 0 : index
    %10 = vector.load %arg6[%c0_12, %c0_13] : memref<8x128xf32, #tpu.memory_space<vmem>>, vector<8x128xf32>
    %cst_14 = arith.constant dense<0.000000e+00> : vector<16x128xf32>
    %11 = tpu.matmul %7, %10, %cst_14 {dimension_numbers = #tpu.dot_dimension_numbers<[1], [0], [0], [1], [0, 0, 1, 1], [], []>} : vector<16x8xf32>, vector<8x128xf32>, vector<16x128xf32> -> vector<16x128xf32>
    %c0_15 = arith.constant 0 : index
    %c0_16 = arith.constant 0 : index
    %12 = vector.load %arg7[%c0_15, %c0_16] : memref<1x128xf32, #tpu.memory_space<vmem>>, vector<1x128xf32>
    %13 = vector.broadcast %8 : vector<16x1xf32> to vector<16x128xf32>
    %14 = vector.broadcast %12 : vector<1x128xf32> to vector<16x128xf32>
    %15 = arith.mulf %13, %14 : vector<16x128xf32>
    %16 = arith.addf %11, %15 : vector<16x128xf32>
    %c0_17 = arith.constant 0 : index
    %c0_18 = arith.constant 0 : index
    %17 = vector.load %arg8[%c0_17, %c0_18] : memref<128x128xf32, #tpu.memory_space<vmem>>, vector<128x128xf32>
    %cst_19 = arith.constant dense<0.000000e+00> : vector<16x128xf32>
    %18 = tpu.matmul %9, %17, %cst_19 {dimension_numbers = #tpu.dot_dimension_numbers<[1], [0], [0], [1], [0, 0, 1, 1], [], []>} : vector<16x128xf32>, vector<128x128xf32>, vector<16x128xf32> -> vector<16x128xf32>
    %c0_20 = arith.constant 0 : index
    %c0_21 = arith.constant 0 : index
    %19 = vector.load %arg9[%c0_20, %c0_21] : memref<128x128xf32, #tpu.memory_space<vmem>>, vector<128x128xf32>
    %cst_22 = arith.constant dense<0.000000e+00> : vector<16x128xf32>
    %20 = tpu.matmul %16, %19, %cst_22 {dimension_numbers = #tpu.dot_dimension_numbers<[1], [0], [0], [1], [0, 0, 1, 1], [], []>} : vector<16x128xf32>, vector<128x128xf32>, vector<16x128xf32> -> vector<16x128xf32>
    %21 = arith.addf %18, %20 : vector<16x128xf32>
    %c0_23 = arith.constant 0 : index
    %c0_24 = arith.constant 0 : index
    %22 = vector.load %arg10[%c0_23, %c0_24] : memref<1x128xf32, #tpu.memory_space<vmem>>, vector<1x128xf32>
    %23 = vector.broadcast %22 : vector<1x128xf32> to vector<16x128xf32>
    %24 = arith.addf %21, %23 : vector<16x128xf32>
    %cst_25 = arith.constant 0.000000e+00 : f32
    %25 = vector.broadcast %cst_25 : f32 to vector<16x128xf32>
    %26 = arith.maximumf %24, %25 : vector<16x128xf32>
    %c0_26 = arith.constant 0 : index
    %c0_27 = arith.constant 0 : index
    %27 = vector.load %arg11[%c0_26, %c0_27] : memref<128x128xf32, #tpu.memory_space<vmem>>, vector<128x128xf32>
    %cst_28 = arith.constant dense<0.000000e+00> : vector<16x128xf32>
    %28 = tpu.matmul %26, %27, %cst_28 {dimension_numbers = #tpu.dot_dimension_numbers<[1], [0], [0], [1], [0, 0, 1, 1], [], []>} : vector<16x128xf32>, vector<128x128xf32>, vector<16x128xf32> -> vector<16x128xf32>
    %c0_29 = arith.constant 0 : index
    %c0_30 = arith.constant 0 : index
    %29 = vector.load %arg12[%c0_29, %c0_30] : memref<1x128xf32, #tpu.memory_space<vmem>>, vector<1x128xf32>
    %30 = vector.broadcast %29 : vector<1x128xf32> to vector<16x128xf32>
    %31 = arith.addf %28, %30 : vector<16x128xf32>
    %cst_31 = arith.constant 0.000000e+00 : f32
    %32 = vector.broadcast %cst_31 : f32 to vector<16x128xf32>
    %33 = arith.maximumf %31, %32 : vector<16x128xf32>
    %cst_32 = arith.constant dense<0.000000e+00> : vector<16x128xf32>
    %34 = tpu.matmul %6, %33, %cst_32 {dimension_numbers = #tpu.dot_dimension_numbers<[1], [0], [0], [1], [0, 0, 1, 1], [], []>} : vector<16x16xf32>, vector<16x128xf32>, vector<16x128xf32> -> vector<16x128xf32>
    %c0_33 = arith.constant 0 : index
    %c0_34 = arith.constant 0 : index
    %35 = vector.load %arg13[%c0_33, %c0_34] : memref<8x128xf32, #tpu.memory_space<vmem>>, vector<8x128xf32>
    %cst_35 = arith.constant dense<0.000000e+00> : vector<16x128xf32>
    %36 = tpu.matmul %7, %35, %cst_35 {dimension_numbers = #tpu.dot_dimension_numbers<[1], [0], [0], [1], [0, 0, 1, 1], [], []>} : vector<16x8xf32>, vector<8x128xf32>, vector<16x128xf32> -> vector<16x128xf32>
    %c0_36 = arith.constant 0 : index
    %c0_37 = arith.constant 0 : index
    %37 = vector.load %arg14[%c0_36, %c0_37] : memref<1x128xf32, #tpu.memory_space<vmem>>, vector<1x128xf32>
    %38 = vector.broadcast %8 : vector<16x1xf32> to vector<16x128xf32>
    %39 = vector.broadcast %37 : vector<1x128xf32> to vector<16x128xf32>
    %40 = arith.mulf %38, %39 : vector<16x128xf32>
    %41 = arith.addf %36, %40 : vector<16x128xf32>
    %c0_38 = arith.constant 0 : index
    %c0_39 = arith.constant 0 : index
    %42 = vector.load %arg15[%c0_38, %c0_39] : memref<128x128xf32, #tpu.memory_space<vmem>>, vector<128x128xf32>
    %cst_40 = arith.constant dense<0.000000e+00> : vector<16x128xf32>
    %43 = tpu.matmul %34, %42, %cst_40 {dimension_numbers = #tpu.dot_dimension_numbers<[1], [0], [0], [1], [0, 0, 1, 1], [], []>} : vector<16x128xf32>, vector<128x128xf32>, vector<16x128xf32> -> vector<16x128xf32>
    %c0_41 = arith.constant 0 : index
    %c0_42 = arith.constant 0 : index
    %44 = vector.load %arg16[%c0_41, %c0_42] : memref<128x128xf32, #tpu.memory_space<vmem>>, vector<128x128xf32>
    %cst_43 = arith.constant dense<0.000000e+00> : vector<16x128xf32>
    %45 = tpu.matmul %41, %44, %cst_43 {dimension_numbers = #tpu.dot_dimension_numbers<[1], [0], [0], [1], [0, 0, 1, 1], [], []>} : vector<16x128xf32>, vector<128x128xf32>, vector<16x128xf32> -> vector<16x128xf32>
    %46 = arith.addf %43, %45 : vector<16x128xf32>
    %c0_44 = arith.constant 0 : index
    %c0_45 = arith.constant 0 : index
    %47 = vector.load %arg17[%c0_44, %c0_45] : memref<1x128xf32, #tpu.memory_space<vmem>>, vector<1x128xf32>
    %48 = vector.broadcast %47 : vector<1x128xf32> to vector<16x128xf32>
    %49 = arith.addf %46, %48 : vector<16x128xf32>
    %cst_46 = arith.constant 0.000000e+00 : f32
    %50 = vector.broadcast %cst_46 : f32 to vector<16x128xf32>
    %51 = arith.maximumf %49, %50 : vector<16x128xf32>
    %c0_47 = arith.constant 0 : index
    %c0_48 = arith.constant 0 : index
    %52 = vector.load %arg18[%c0_47, %c0_48] : memref<128x128xf32, #tpu.memory_space<vmem>>, vector<128x128xf32>
    %cst_49 = arith.constant dense<0.000000e+00> : vector<16x128xf32>
    %53 = tpu.matmul %51, %52, %cst_49 {dimension_numbers = #tpu.dot_dimension_numbers<[1], [0], [0], [1], [0, 0, 1, 1], [], []>} : vector<16x128xf32>, vector<128x128xf32>, vector<16x128xf32> -> vector<16x128xf32>
    %c0_50 = arith.constant 0 : index
    %c0_51 = arith.constant 0 : index
    %54 = vector.load %arg19[%c0_50, %c0_51] : memref<1x128xf32, #tpu.memory_space<vmem>>, vector<1x128xf32>
    %55 = vector.broadcast %54 : vector<1x128xf32> to vector<16x128xf32>
    %56 = arith.addf %53, %55 : vector<16x128xf32>
    %c0_52 = arith.constant 0 : index
    %c0_53 = arith.constant 0 : index
    %57 = vector.load %arg20[%c0_52, %c0_53] : memref<16x128xf32, #tpu.memory_space<vmem>>, vector<16x128xf32>
    tpu.vector_store %arg20[%c0_52, %c0_53], %56 {strides = array<i32>} : memref<16x128xf32, #tpu.memory_space<vmem>>, vector<16x128xf32>,
    return
  }
}

</mosaic_0001>

<llo_original>
// kernel: tpu_custom_call.1
$region0: #{tpu_custom_call.1}
  #allocation0 [shape = 'u32[]', space=smem, size = 0x4, offset = 0x4, fixed_abs, tag = 'smem constant byte address 0x4 - core index']
  #allocation1 [shape = 'u32[144,128]{1,0:T(1,128)}', space=vmem, size = 0x12000, scoped, tag = 'internal scratch']
  %s0 = inlined_call_operand.hbm [shape: f32[16,1024], index: 0, kind: input, shape index: {}]
  %s1 = inlined_call_operand.vmem [shape: f32[16,16], index: 1, kind: input, shape index: {}]
  %s2 = inlined_call_operand.vmem [shape: f32[16,8], index: 2, kind: input, shape index: {}]
  %s3 = inlined_call_operand.vmem [shape: f32[16,1], index: 3, kind: input, shape index: {}]
  %s4 = inlined_call_operand.hbm [shape: f32[1024,128], index: 4, kind: input, shape index: {}]
  %s5 = inlined_call_operand.vmem [shape: f32[1,128], index: 5, kind: input, shape index: {}]
  %s6 = inlined_call_operand.vmem [shape: f32[8,128], index: 6, kind: input, shape index: {}]
  %s7 = inlined_call_operand.vmem [shape: f32[1,128], index: 7, kind: input, shape index: {}]
  %s8 = inlined_call_operand.hbm [shape: f32[128,128], index: 8, kind: input, shape index: {}]
  %s9 = inlined_call_operand.hbm [shape: f32[128,128], index: 9, kind: input, shape index: {}]
  %s10 = inlined_call_operand.vmem [shape: f32[1,128], index: 10, kind: input, shape index: {}]
  %s11 = inlined_call_operand.hbm [shape: f32[128,128], index: 11, kind: input, shape index: {}]
  %s12 = inlined_call_operand.vmem [shape: f32[1,128], index: 12, kind: input, shape index: {}]
  %s13 = inlined_call_operand.vmem [shape: f32[8,128], index: 13, kind: input, shape index: {}]
  %s14 = inlined_call_operand.vmem [shape: f32[1,128], index: 14, kind: input, shape index: {}]
  %s15 = inlined_call_operand.hbm [shape: f32[128,128], index: 15, kind: input, shape index: {}]
  %s16 = inlined_call_operand.hbm [shape: f32[128,128], index: 16, kind: input, shape index: {}]
  %s17 = inlined_call_operand.vmem [shape: f32[1,128], index: 17, kind: input, shape index: {}]
  %s18 = inlined_call_operand.hbm [shape: f32[128,128], index: 18, kind: input, shape index: {}]
  %s19 = inlined_call_operand.vmem [shape: f32[1,128], index: 19, kind: input, shape index: {}]
  %s20 = inlined_call_operand.hbm [shape: f32[16,128], index: 20, kind: output, shape index: {}]
  %s21 = sld [smem:[#allocation0]]
  $region122: #{tpu_custom_call.1} parent=0
    _
  %s23 = ssub.s32 1, %s21
  %s24 = scalar_select 0, %s23, %s21
  $region1: #{tpu_custom_call.1} parent=0
    #allocation2 [shape = 'u8[65536]{0}', space=vmem, size = 0x10000, scoped, tag = 'input window, operand 0, single buffered']
    #allocation3 [shape = 's32[1]{0}', space=sflag, size = 0x4, scoped, tag = 'scoped memory for tpu_custom_call.1']
    #allocation4 [shape = 's32[1]{0}', space=sflag, size = 0x4, scoped, tag = 'scoped memory for tpu_custom_call.1']
    #allocation5 [shape = 'u8[524288]{0}', space=vmem, size = 0x80000, scoped, tag = 'input window, operand 4, single buffered']
    #allocation6 [shape = 's32[1]{0}', space=sflag, size = 0x4, scoped, tag = 'scoped memory for tpu_custom_call.1']
    #allocation7 [shape = 'u8[65536]{0}', space=vmem, size = 0x10000, scoped, tag = 'input window, operand 8, single buffered']
    #allocation8 [shape = 'u8[65536]{0}', space=vmem, size = 0x10000, scoped, tag = 'input window, operand 9, single buffered']
    #allocation9 [shape = 's32[1]{0}', space=sflag, size = 0x4, scoped, tag = 'scoped memory for tpu_custom_call.1']
    #allocation10 [shape = 'u8[65536]{0}', space=vmem, size = 0x10000, scoped, tag = 'input window, operand 11, single buffered']
    #allocation11 [shape = 'u8[65536]{0}', space=vmem, size = 0x10000, scoped, tag = 'input window, operand 15, single buffered']
    #allocation12 [shape = 's32[1]{0}', space=sflag, size = 0x4, scoped, tag = 'scoped memory for tpu_custom_call.1']
    #allocation13 [shape = 'u8[65536]{0}', space=vmem, size = 0x10000, scoped, tag = 'input window, operand 16, single buffered']
    #allocation14 [shape = 'u8[65536]{0}', space=vmem, size = 0x10000, scoped, tag = 'input window, operand 18, single buffered']
    #allocation15 [shape = 's32[1]{0}', space=sflag, size = 0x4, scoped, tag = 'scoped memory for tpu_custom_call.1']
    #allocation16 [shape = 'u8[8192]{0}', space=vmem, size = 0x2000, scoped, tag = 'output window, operand 0, single buffered']
    %25 = vsyncpa [#allocation3], 0
    %26 = vsyncpa [#allocation6], 0
    %27 = vsyncpa [#allocation9], 0
    %28 = vsyncpa [#allocation12], 0
    %29 = vsyncpa [#allocation15], 0
    %30 = vsyncpa [#allocation4], 0
    // Predicated region
    $region2: #{tpu_custom_call.1} parent=1 // pred_check
      _
    $region3: #{tpu_custom_call.1} parent=1 // pred_check_branch
      %32 = sbr.rel (0) target = $region5
    $region4: #{tpu_custom_call.1} parent=1 // pred_region
      %s34 = ssub.s32 2048, 2048
      %35 = vsyncadd [#allocation3], %s34
      %s36 = sshll.u32 [#allocation2], 4
      %s37 = int_to_ptr.vmem [resolvable:$true] %s36
      %42 = dma.hbm_to_vmem [thread:$0]  %s0, 2048, %s37, [#allocation3], 1024, 1024, 64
    $region5: #{tpu_custom_call.1} parent=1 // pred_fallthru
      _
    // Predicated region
    $region6: #{tpu_custom_call.1} parent=1 // pred_check
      _
    $region7: #{tpu_custom_call.1} parent=1 // pred_check_branch
      %44 = sbr.rel (0) target = $region9
    $region8: #{tpu_custom_call.1} parent=1 // pred_region
      _
    $region9: #{tpu_custom_call.1} parent=1 // pred_fallthru
      _
    // Predicated region
    $region10: #{tpu_custom_call.1} parent=1 // pred_check
      _
    $region11: #{tpu_custom_call.1} parent=1 // pred_check_branch
      %46 = sbr.rel (0) target = $region13
    $region12: #{tpu_custom_call.1} parent=1 // pred_region
      _
    $region13: #{tpu_custom_call.1} parent=1 // pred_fallthru
      _
    // Predicated region
    $region14: #{tpu_custom_call.1} parent=1 // pred_check
      _
    $region15: #{tpu_custom_call.1} parent=1 // pred_check_branch
      %48 = sbr.rel (0) target = $region17
    $region16: #{tpu_custom_call.1} parent=1 // pred_region
      _
    $region17: #{tpu_custom_call.1} parent=1 // pred_fallthru
      _
    // Predicated region
    $region18: #{tpu_custom_call.1} parent=1 // pred_check
      _
    $region19: #{tpu_custom_call.1} parent=1 // pred_check_branch
      %50 = sbr.rel (0) target = $region21
    $region20: #{tpu_custom_call.1} parent=1 // pred_region
      %s52 = ssub.s32 16384, 16384
      %53 = vsyncadd [#allocation6], %s52
      %s54 = sshll.u32 [#allocation5], 4
      %s55 = int_to_ptr.vmem [resolvable:$true] %s54
      %60 = dma.hbm_to_vmem [thread:$0]  %s4, 16384, %s55, [#allocation6], 128, 128, 8
    $region21: #{tpu_custom_call.1} parent=1 // pred_fallthru
      _
    // Predicated region
    $region22: #{tpu_custom_call.1} parent=1 // pred_check
      _
    $region23: #{tpu_custom_call.1} parent=1 // pred_check_branch
      %62 = sbr.rel (0) target = $region25
    $region24: #{tpu_custom_call.1} parent=1 // pred_region
      _
    $region25: #{tpu_custom_call.1} parent=1 // pred_fallthru
      _
    // Predicated region
    $region26: #{tpu_custom_call.1} parent=1 // pred_check
      _
    $region27: #{tpu_custom_call.1} parent=1 // pred_check_branch
      %64 = sbr.rel (0) target = $region29
    $region28: #{tpu_custom_call.1} parent=1 // pred_region
      _
    $region29: #{tpu_custom_call.1} parent=1 // pred_fallthru
      _
    // Predicated region
    $region30: #{tpu_custom_call.1} parent=1 // pred_check
      _
    $region31: #{tpu_custom_call.1} parent=1 // pred_check_branch
      %66 = sbr.rel (0) target = $region33
    $region32: #{tpu_custom_call.1} parent=1 // pred_region
      _
    $region33: #{tpu_custom_call.1} parent=1 // pred_fallthru
      _
    // Predicated region
    $region34: #{tpu_custom_call.1} parent=1 // pred_check
      _
    $region35: #{tpu_custom_call.1} parent=1 // pred_check_branch
      %68 = sbr.rel (0) target = $region37
    $region36: #{tpu_custom_call.1} parent=1 // pred_region
      %s70 = ssub.s32 2048, 2048
      %71 = vsyncadd [#allocation6], %s70
      %s72 = sshll.u32 [#allocation7], 4
      %s73 = int_to_ptr.vmem [resolvable:$true] %s72
      %78 = dma.hbm_to_vmem [thread:$0]  %s8, 2048, %s73, [#allocation6], 128, 128, 8
    $region37: #{tpu_custom_call.1} parent=1 // pred_fallthru
      _
    // Predicated region
    $region38: #{tpu_custom_call.1} parent=1 // pred_check
      _
    $region39: #{tpu_custom_call.1} parent=1 // pred_check_branch
      %80 = sbr.rel (0) target = $region41
    $region40: #{tpu_custom_call.1} parent=1 // pred_region
      %s82 = ssub.s32 2048, 2048
      %83 = vsyncadd [#allocation9], %s82
      %s84 = sshll.u32 [#allocation8], 4
      %s85 = int_to_ptr.vmem [resolvable:$true] %s84
      %90 = dma.hbm_to_vmem [thread:$0]  %s9, 2048, %s85, [#allocation9], 128, 128, 8
    $region41: #{tpu_custom_call.1} parent=1 // pred_fallthru
      _
    // Predicated region
    $region42: #{tpu_custom_call.1} parent=1 // pred_check
      _
    $region43: #{tpu_custom_call.1} parent=1 // pred_check_branch
      %92 = sbr.rel (0) target = $region45
    $region44: #{tpu_custom_call.1} parent=1 // pred_region
      _
    $region45: #{tpu_custom_call.1} parent=1 // pred_fallthru
      _
    // Predicated region
    $region46: #{tpu_custom_call.1} parent=1 // pred_check
      _
    $region47: #{tpu_custom_call.1} parent=1 // pred_check_branch
      %94 = sbr.rel (0) target = $region49
    $region48: #{tpu_custom_call.1} parent=1 // pred_region
      %s96 = ssub.s32 2048, 2048
      %97 = vsyncadd [#allocation9], %s96
      %s98 = sshll.u32 [#allocation10], 4
      %s99 = int_to_ptr.vmem [resolvable:$true] %s98
      %104 = dma.hbm_to_vmem [thread:$0]  %s11, 2048, %s99, [#allocation9], 128, 128, 8
    $region49: #{tpu_custom_call.1} parent=1 // pred_fallthru
      _
    // Predicated region
    $region50: #{tpu_custom_call.1} parent=1 // pred_check
      _
    $region51: #{tpu_custom_call.1} parent=1 // pred_check_branch
      %106 = sbr.rel (0) target = $region53
    $region52: #{tpu_custom_call.1} parent=1 // pred_region
      _
    $region53: #{tpu_custom_call.1} parent=1 // pred_fallthru
      _
    // Predicated region
    $region54: #{tpu_custom_call.1} parent=1 // pred_check
      _
    $region55: #{tpu_custom_call.1} parent=1 // pred_check_branch
      %108 = sbr.rel (0) target = $region57
    $region56: #{tpu_custom_call.1} parent=1 // pred_region
      _
    $region57: #{tpu_custom_call.1} parent=1 // pred_fallthru
      _
    // Predicated region
    $region58: #{tpu_custom_call.1} parent=1 // pred_check
      _
    $region59: #{tpu_custom_call.1} parent=1 // pred_check_branch
      %110 = sbr.rel (0) target = $region61
    $region60: #{tpu_custom_call.1} parent=1 // pred_region
      _
    $region61: #{tpu_custom_call.1} parent=1 // pred_fallthru
      _
    // Predicated region
    $region62: #{tpu_custom_call.1} parent=1 // pred_check
      _
    $region63: #{tpu_custom_call.1} parent=1 // pred_check_branch
      %112 = sbr.rel (0) target = $region65
    $region64: #{tpu_custom_call.1} parent=1 // pred_region
      %s114 = ssub.s32 2048, 2048
      %115 = vsyncadd [#allocation12], %s114
      %s116 = sshll.u32 [#allocation11], 4
      %s117 = int_to_ptr.vmem [resolvable:$true] %s116
      %122 = dma.hbm_to_vmem [thread:$0]  %s15, 2048, %s117, [#allocation12], 128, 128, 8
    $region65: #{tpu_custom_call.1} parent=1 // pred_fallthru
      _
    // Predicated region
    $region66: #{tpu_custom_call.1} parent=1 // pred_check
      _
    $region67: #{tpu_custom_call.1} parent=1 // pred_check_branch
      %124 = sbr.rel (0) target = $region69
    $region68: #{tpu_custom_call.1} parent=1 // pred_region
      %s126 = ssub.s32 2048, 2048
      %127 = vsyncadd [#allocation12], %s126
      %s128 = sshll.u32 [#allocation13], 4
      %s129 = int_to_ptr.vmem [resolvable:$true] %s128
      %134 = dma.hbm_to_vmem [thread:$0]  %s16, 2048, %s129, [#allocation12], 128, 128, 8
    $region69: #{tpu_custom_call.1} parent=1 // pred_fallthru
      _
    // Predicated region
    $region70: #{tpu_custom_call.1} parent=1 // pred_check
      _
    $region71: #{tpu_custom_call.1} parent=1 // pred_check_branch
      %136 = sbr.rel (0) target = $region73
    $region72: #{tpu_custom_call.1} parent=1 // pred_region
      _
    $region73: #{tpu_custom_call.1} parent=1 // pred_fallthru
      _
    // Predicated region
    $region74: #{tpu_custom_call.1} parent=1 // pred_check
      _
    $region75: #{tpu_custom_call.1} parent=1 // pred_check_branch
      %138 = sbr.rel (0) target = $region77
    $region76: #{tpu_custom_call.1} parent=1 // pred_region
      %s140 = ssub.s32 2048, 2048
      %141 = vsyncadd [#allocation15], %s140
      %s142 = sshll.u32 [#allocation14], 4
      %s143 = int_to_ptr.vmem [resolvable:$true] %s142
      %148 = dma.hbm_to_vmem [thread:$0]  %s18, 2048, %s143, [#allocation15], 128, 128, 8
    $region77: #{tpu_custom_call.1} parent=1 // pred_fallthru
      _
    // Predicated region
    $region78: #{tpu_custom_call.1} parent=1 // pred_check
      _
    $region79: #{tpu_custom_call.1} parent=1 // pred_check_branch
      %150 = sbr.rel (0) target = $region81
    $region80: #{tpu_custom_call.1} parent=1 // pred_region
      _
    $region81: #{tpu_custom_call.1} parent=1 // pred_fallthru
      _
    // Predicated region
    $region82: #{tpu_custom_call.1} parent=1 // pred_check
      _
    $region83: #{tpu_custom_call.1} parent=1 // pred_check_branch
      %152 = sbr.rel (0) target = $region85
    $region84: #{tpu_custom_call.1} parent=1 // pred_region
      %153 = dma.done [#allocation3], 2048
    $region85: #{tpu_custom_call.1} parent=1 // pred_fallthru
      _
    // Predicated region
    $region86: #{tpu_custom_call.1} parent=1 // pred_check
      _
    $region87: #{tpu_custom_call.1} parent=1 // pred_check_branch
      %155 = sbr.rel (0) target = $region89
    $region88: #{tpu_custom_call.1} parent=1 // pred_region
      %156 = dma.done [#allocation6], 16384
    $region89: #{tpu_custom_call.1} parent=1 // pred_fallthru
      _
    // Predicated region
    $region90: #{tpu_custom_call.1} parent=1 // pred_check
      _
    $region91: #{tpu_custom_call.1} parent=1 // pred_check_branch
      %158 = sbr.rel (0) target = $region93
    $region92: #{tpu_custom_call.1} parent=1 // pred_region
      %159 = dma.done [#allocation6], 2048
    $region93: #{tpu_custom_call.1} parent=1 // pred_fallthru
      _
    // Predicated region
    $region94: #{tpu_custom_call.1} parent=1 // pred_check
      _
    $region95: #{tpu_custom_call.1} parent=1 // pred_check_branch
      %161 = sbr.rel (0) target = $region97
    $region96: #{tpu_custom_call.1} parent=1 // pred_region
      %162 = dma.done [#allocation9], 2048
    $region97: #{tpu_custom_call.1} parent=1 // pred_fallthru
      _
    // Predicated region
    $region98: #{tpu_custom_call.1} parent=1 // pred_check
      _
    $region99: #{tpu_custom_call.1} parent=1 // pred_check_branch
      %164 = sbr.rel (0) target = $region101
    $region100: #{tpu_custom_call.1} parent=1 // pred_region
      %165 = dma.done [#allocation9], 2048
    $region101: #{tpu_custom_call.1} parent=1 // pred_fallthru
      _
    // Predicated region
    $region102: #{tpu_custom_call.1} parent=1 // pred_check
      _
    $region103: #{tpu_custom_call.1} parent=1 // pred_check_branch
      %167 = sbr.rel (0) target = $region105
    $region104: #{tpu_custom_call.1} parent=1 // pred_region
      %168 = dma.done [#allocation12], 2048
    $region105: #{tpu_custom_call.1} parent=1 // pred_fallthru
      _
    // Predicated region
    $region106: #{tpu_custom_call.1} parent=1 // pred_check
      _
    $region107: #{tpu_custom_call.1} parent=1 // pred_check_branch
      %170 = sbr.rel (0) target = $region109
    $region108: #{tpu_custom_call.1} parent=1 // pred_region
      %171 = dma.done [#allocation12], 2048
    $region109: #{tpu_custom_call.1} parent=1 // pred_fallthru
      _
    // Predicated region
    $region110: #{tpu_custom_call.1} parent=1 // pred_check
      _
    $region111: #{tpu_custom_call.1} parent=1 // pred_check_branch
      %173 = sbr.rel (0) target = $region113
    $region112: #{tpu_custom_call.1} parent=1 // pred_region
      %174 = dma.done [#allocation15], 2048
    $region113: #{tpu_custom_call.1} parent=1 // pred_fallthru
      _
    %v175 = vld [vmem:[#allocation2] sm:$0xff]
    %v176 = vld [vmem:[#allocation2 + $0x8] sm:$0xff]
    %v177 = vld [vmem:[#allocation2 + $0x10] sm:$0xff]
    %v178 = vld [vmem:[#allocation2 + $0x18] sm:$0xff]
    %v179 = vld [vmem:[#allocation2 + $0x20] sm:$0xff]
    %v180 = vld [vmem:[#allocation2 + $0x28] sm:$0xff]
    %v181 = vld [vmem:[#allocation2 + $0x30] sm:$0xff]
    %v182 = vld [vmem:[#allocation2 + $0x38] sm:$0xff]
    %v183 = vld [vmem:[#allocation2 + $0x40] sm:$0xff]
    %v184 = vld [vmem:[#allocation2 + $0x48] sm:$0xff]
    %v185 = vld [vmem:[#allocation2 + $0x50] sm:$0xff]
    %v186 = vld [vmem:[#allocation2 + $0x58] sm:$0xff]
    %v187 = vld [vmem:[#allocation2 + $0x60] sm:$0xff]
    %v188 = vld [vmem:[#allocation2 + $0x68] sm:$0xff]
    %v189 = vld [vmem:[#allocation2 + $0x70] sm:$0xff]
    %v190 = vld [vmem:[#allocation2 + $0x78] sm:$0xff]
    %v191 = vld [vmem:[#allocation5] sm:$0xff]
    %v192 = vld [vmem:[#allocation5 + $0x8] sm:$0xff]
    %v193 = vld [vmem:[#allocation5 + $0x10] sm:$0xff]
    %v194 = vld [vmem:[#allocation5 + $0x18] sm:$0xff]
    %v195 = vld [vmem:[#allocation5 + $0x20] sm:$0xff]
    %v196 = vld [vmem:[#allocation5 + $0x28] sm:$0xff]
    %v197 = vld [vmem:[#allocation5 + $0x30] sm:$0xff]
    %v198 = vld [vmem:[#allocation5 + $0x38] sm:$0xff]
    %v199 = vld [vmem:[#allocation5 + $0x40] sm:$0xff]
    %v200 = vld [vmem:[#allocation5 + $0x48] sm:$0xff]
    %v201 = vld [vmem:[#allocation5 + $0x50] sm:$0xff]
    %v202 = vld [vmem:[#allocation5 + $0x58] sm:$0xff]
    %v203 = vld [vmem:[#allocation5 + $0x60] sm:$0xff]
    %v204 = vld [vmem:[#allocation5 + $0x68] sm:$0xff]
    %v205 = vld [vmem:[#allocation5 + $0x70] sm:$0xff]
    %v206 = vld [vmem:[#allocation5 + $0x78] sm:$0xff]
    %v207 = vld [vmem:[#allocation5 + $0x80] sm:$0xff]
    %v208 = vld [vmem:[#allocation5 + $0x88] sm:$0xff]
    %v209 = vld [vmem:[#allocation5 + $0x90] sm:$0xff]
    %v210 = vld [vmem:[#allocation5 + $0x98] sm:$0xff]
    %v211 = vld [vmem:[#allocation5 + $0xa0] sm:$0xff]
    %v212 = vld [vmem:[#allocation5 + $0xa8] sm:$0xff]
    %v213 = vld [vmem:[#allocation5 + $0xb0] sm:$0xff]
    %v214 = vld [vmem:[#allocation5 + $0xb8] sm:$0xff]
    %v215 = vld [vmem:[#allocation5 + $0xc0] sm:$0xff]
    %v216 = vld [vmem:[#allocation5 + $0xc8] sm:$0xff]
    %v217 = vld [vmem:[#allocation5 + $0xd0] sm:$0xff]
    %v218 = vld [vmem:[#allocation5 + $0xd8] sm:$0xff]
    %v219 = vld [vmem:[#allocation5 + $0xe0] sm:$0xff]
    %v220 = vld [vmem:[#allocation5 + $0xe8] sm:$0xff]
    %v221 = vld [vmem:[#allocation5 + $0xf0] sm:$0xff]
    %v222 = vld [vmem:[#allocation5 + $0xf8] sm:$0xff]
    %v223 = vld [vmem:[#allocation5 + $0x100] sm:$0xff]
    %v224 = vld [vmem:[#allocation5 + $0x108] sm:$0xff]
    %v225 = vld [vmem:[#allocation5 + $0x110] sm:$0xff]
    %v226 = vld [vmem:[#allocation5 + $0x118] sm:$0xff]
    %v227 = vld [vmem:[#allocation5 + $0x120] sm:$0xff]
    %v228 = vld [vmem:[#allocation5 + $0x128] sm:$0xff]
    %v229 = vld [vmem:[#allocation5 + $0x130] sm:$0xff]
    %v230 = vld [vmem:[#allocation5 + $0x138] sm:$0xff]
    %v231 = vld [vmem:[#allocation5 + $0x140] sm:$0xff]
    %v232 = vld [vmem:[#allocation5 + $0x148] sm:$0xff]
    %v233 = vld [vmem:[#allocation5 + $0x150] sm:$0xff]
    %v234 = vld [vmem:[#allocation5 + $0x158] sm:$0xff]
    %v235 = vld [vmem:[#allocation5 + $0x160] sm:$0xff]
    %v236 = vld [vmem:[#allocation5 + $0x168] sm:$0xff]
    %v237 = vld [vmem:[#allocation5 + $0x170] sm:$0xff]
    %v238 = vld [vmem:[#allocation5 + $0x178] sm:$0xff]
    %v239 = vld [vmem:[#allocation5 + $0x180] sm:$0xff]
    %v240 = vld [vmem:[#allocation5 + $0x188] sm:$0xff]
    %v241 = vld [vmem:[#allocation5 + $0x190] sm:$0xff]
    %v242 = vld [vmem:[#allocation5 + $0x198] sm:$0xff]
    %v243 = vld [vmem:[#allocation5 + $0x1a0] sm:$0xff]
    %v244 = vld [vmem:[#allocation5 + $0x1a8] sm:$0xff]
    %v245 = vld [vmem:[#allocation5 + $0x1b0] sm:$0xff]
    %v246 = vld [vmem:[#allocation5 + $0x1b8] sm:$0xff]
    %v247 = vld [vmem:[#allocation5 + $0x1c0] sm:$0xff]
    %v248 = vld [vmem:[#allocation5 + $0x1c8] sm:$0xff]
    %v249 = vld [vmem:[#allocation5 + $0x1d0] sm:$0xff]
    %v250 = vld [vmem:[#allocation5 + $0x1d8] sm:$0xff]
    %v251 = vld [vmem:[#allocation5 + $0x1e0] sm:$0xff]
    %v252 = vld [vmem:[#allocation5 + $0x1e8] sm:$0xff]
    %v253 = vld [vmem:[#allocation5 + $0x1f0] sm:$0xff]
    %v254 = vld [vmem:[#allocation5 + $0x1f8] sm:$0xff]
    %v255 = vld [vmem:[#allocation5 + $0x200] sm:$0xff]
    %v256 = vld [vmem:[#allocation5 + $0x208] sm:$0xff]
    %v257 = vld [vmem:[#allocation5 + $0x210] sm:$0xff]
    %v258 = vld [vmem:[#allocation5 + $0x218] sm:$0xff]
    %v259 = vld [vmem:[#allocation5 + $0x220] sm:$0xff]
    %v260 = vld [vmem:[#allocation5 + $0x228] sm:$0xff]
    %v261 = vld [vmem:[#allocation5 + $0x230] sm:$0xff]
    %v262 = vld [vmem:[#allocation5 + $0x238] sm:$0xff]
    %v263 = vld [vmem:[#allocation5 + $0x240] sm:$0xff]
    %v264 = vld [vmem:[#allocation5 + $0x248] sm:$0xff]
    %v265 = vld [vmem:[#allocation5 + $0x250] sm:$0xff]
    %v266 = vld [vmem:[#allocation5 + $0x258] sm:$0xff]
    %v267 = vld [vmem:[#allocation5 + $0x260] sm:$0xff]
    %v268 = vld [vmem:[#allocation5 + $0x268] sm:$0xff]
    %v269 = vld [vmem:[#allocation5 + $0x270] sm:$0xff]
    %v270 = vld [vmem:[#allocation5 + $0x278] sm:$0xff]
    %v271 = vld [vmem:[#allocation5 + $0x280] sm:$0xff]
    %v272 = vld [vmem:[#allocation5 + $0x288] sm:$0xff]
    %v273 = vld [vmem:[#allocation5 + $0x290] sm:$0xff]
    %v274 = vld [vmem:[#allocation5 + $0x298] sm:$0xff]
    %v275 = vld [vmem:[#allocation5 + $0x2a0] sm:$0xff]
    %v276 = vld [vmem:[#allocation5 + $0x2a8] sm:$0xff]
    %v277 = vld [vmem:[#allocation5 + $0x2b0] sm:$0xff]
    %v278 = vld [vmem:[#allocation5 + $0x2b8] sm:$0xff]
    %v279 = vld [vmem:[#allocation5 + $0x2c0] sm:$0xff]
    %v280 = vld [vmem:[#allocation5 + $0x2c8] sm:$0xff]
    %v281 = vld [vmem:[#allocation5 + $0x2d0] sm:$0xff]
    %v282 = vld [vmem:[#allocation5 + $0x2d8] sm:$0xff]
    %v283 = vld [vmem:[#allocation5 + $0x2e0] sm:$0xff]
    %v284 = vld [vmem:[#allocation5 + $0x2e8] sm:$0xff]
    %v285 = vld [vmem:[#allocation5 + $0x2f0] sm:$0xff]
    %v286 = vld [vmem:[#allocation5 + $0x2f8] sm:$0xff]
    %v287 = vld [vmem:[#allocation5 + $0x300] sm:$0xff]
    %v288 = vld [vmem:[#allocation5 + $0x308] sm:$0xff]
    %v289 = vld [vmem:[#allocation5 + $0x310] sm:$0xff]
    %v290 = vld [vmem:[#allocation5 + $0x318] sm:$0xff]
    %v291 = vld [vmem:[#allocation5 + $0x320] sm:$0xff]
    %v292 = vld [vmem:[#allocation5 + $0x328] sm:$0xff]
    %v293 = vld [vmem:[#allocation5 + $0x330] sm:$0xff]
    %v294 = vld [vmem:[#allocation5 + $0x338] sm:$0xff]
    %v295 = vld [vmem:[#allocation5 + $0x340] sm:$0xff]
    %v296 = vld [vmem:[#allocation5 + $0x348] sm:$0xff]
    %v297 = vld [vmem:[#allocation5 + $0x350] sm:$0xff]
    %v298 = vld [vmem:[#allocation5 + $0x358] sm:$0xff]
    %v299 = vld [vmem:[#allocation5 + $0x360] sm:$0xff]
    %v300 = vld [vmem:[#allocation5 + $0x368] sm:$0xff]
    %v301 = vld [vmem:[#allocation5 + $0x370] sm:$0xff]
    %v302 = vld [vmem:[#allocation5 + $0x378] sm:$0xff]
    %v303 = vld [vmem:[#allocation5 + $0x380] sm:$0xff]
    %v304 = vld [vmem:[#allocation5 + $0x388] sm:$0xff]
    %v305 = vld [vmem:[#allocation5 + $0x390] sm:$0xff]
    %v306 = vld [vmem:[#allocation5 + $0x398] sm:$0xff]
    %v307 = vld [vmem:[#allocation5 + $0x3a0] sm:$0xff]
    %v308 = vld [vmem:[#allocation5 + $0x3a8] sm:$0xff]
    %v309 = vld [vmem:[#allocation5 + $0x3b0] sm:$0xff]
    %v310 = vld [vmem:[#allocation5 + $0x3b8] sm:$0xff]
    %v311 = vld [vmem:[#allocation5 + $0x3c0] sm:$0xff]
    %v312 = vld [vmem:[#allocation5 + $0x3c8] sm:$0xff]
    %v313 = vld [vmem:[#allocation5 + $0x3d0] sm:$0xff]
    %v314 = vld [vmem:[#allocation5 + $0x3d8] sm:$0xff]
    %v315 = vld [vmem:[#allocation5 + $0x3e0] sm:$0xff]
    %v316 = vld [vmem:[#allocation5 + $0x3e8] sm:$0xff]
    %v317 = vld [vmem:[#allocation5 + $0x3f0] sm:$0xff]
    %v318 = vld [vmem:[#allocation5 + $0x3f8] sm:$0xff]
    %v319 = vld [vmem:[%s5] sm:$0x1]
    %v321 = vlaneseq
    %v322 = vshrl.u32 %v321, 7
    %v323 = vsub.s32 0, %v322
    %v324 = vrot.slane %v319, %v323
    %326 = vmatprep.subr.mxu0 0.0
    %327 = vmatpush1.msra.mxu0 %v191
    %328 = vmatprep.subr.mxu0 0.0
    %329 = vmatpush1.msra.mxu0 %v192
    %330 = vmatprep.subr.mxu0 0.0
    %331 = vmatpush1.msra.mxu0 %v193
    %332 = vmatprep.subr.mxu0 0.0
    %333 = vmatpush1.msra.mxu0 %v194
    %334 = vmatprep.subr.mxu0 0.0
    %335 = vmatpush1.msra.mxu0 %v195
    %336 = vmatprep.subr.mxu0 0.0
    %337 = vmatpush1.msra.mxu0 %v196
    %338 = vmatprep.subr.mxu0 0.0
    %339 = vmatpush1.msra.mxu0 %v197
    %340 = vmatprep.subr.mxu0 0.0
    %341 = vmatpush1.msra.mxu0 %v198
    %342 = vmatprep.subr.mxu0 0.0
    %343 = vmatpush1.msra.mxu0 %v199
    %344 = vmatprep.subr.mxu0 0.0
    %345 = vmatpush1.msra.mxu0 %v200
    %346 = vmatprep.subr.mxu0 0.0
    %347 = vmatpush1.msra.mxu0 %v201
    %348 = vmatprep.subr.mxu0 0.0
    %349 = vmatpush1.msra.mxu0 %v202
    %350 = vmatprep.subr.mxu0 0.0
    %351 = vmatpush1.msra.mxu0 %v203
    %352 = vmatprep.subr.mxu0 0.0
    %353 = vmatpush1.msra.mxu0 %v204
    %354 = vmatprep.subr.mxu0 0.0
    %355 = vmatpush1.msra.mxu0 %v205
    %356 = vmatprep.subr.mxu0 0.0
    %357 = vmatpush1.msra.mxu0 %v206
    %358 = vmatprep.subr.mxu0 0.0
    %359 = vmatpush1.msra.mxu0 %v207
    %360 = vmatprep.subr.mxu0 0.0
    %361 = vmatpush1.msra.mxu0 %v208
    %362 = vmatprep.subr.mxu0 0.0
    %363 = vmatpush1.msra.mxu0 %v209
    %364 = vmatprep.subr.mxu0 0.0
    %365 = vmatpush1.msra.mxu0 %v210
    %366 = vmatprep.subr.mxu0 0.0
    %367 = vmatpush1.msra.mxu0 %v211
    %368 = vmatprep.subr.mxu0 0.0
    %369 = vmatpush1.msra.mxu0 %v212
    %370 = vmatprep.subr.mxu0 0.0
    %371 = vmatpush1.msra.mxu0 %v213
    %372 = vmatprep.subr.mxu0 0.0
    %373 = vmatpush1.msra.mxu0 %v214
    %374 = vmatprep.subr.mxu0 0.0
    %375 = vmatpush1.msra.mxu0 %v215
    %376 = vmatprep.subr.mxu0 0.0
    %377 = vmatpush1.msra.mxu0 %v216
    %378 = vmatprep.subr.mxu0 0.0
    %379 = vmatpush1.msra.mxu0 %v217
    %380 = vmatprep.subr.mxu0 0.0
    %381 = vmatpush1.msra.mxu0 %v218
    %382 = vmatprep.subr.mxu0 0.0
    %383 = vmatpush1.msra.mxu0 %v219
    %384 = vmatprep.subr.mxu0 0.0
    %385 = vmatpush1.msra.mxu0 %v220
    %386 = vmatprep.subr.mxu0 0.0
    %387 = vmatpush1.msra.mxu0 %v221
    %388 = vmatprep.subr.mxu0 0.0
    %389 = vmatpush1.msra.mxu0 %v222
    %390 = vmatprep.mubr.f32.mxu0 %v176
    %391 = vmatmul.mubr.f32.gmra.mrb[0].mxu0 %v175
    %v392 = vpop.f32.mrb[0].mxu0
    %v393 = vadd.f32 %v324, %v392
    %v394 = vpop.f32.mrb[0].mxu0
    %395 = vmatprep.mubr.f32.mxu0 %v184
    %396 = vmatmul.mubr.f32.gmra.mrb[0].mxu0 %v183
    %v397 = vpop.f32.mrb[0].mxu0
    %v398 = vadd.f32 %v324, %v397
    %v399 = vpop.f32.mrb[0].mxu0
    %400 = vdwg.mxu0
    %401 = vmatprep.subr.mxu0 0.0
    %402 = vmatpush1.msra.mxu0 %v223
    %403 = vmatprep.subr.mxu0 0.0
    %404 = vmatpush1.msra.mxu0 %v224
    %405 = vmatprep.subr.mxu0 0.0
    %406 = vmatpush1.msra.mxu0 %v225
    %407 = vmatprep.subr.mxu0 0.0
    %408 = vmatpush1.msra.mxu0 %v226
    %409 = vmatprep.subr.mxu0 0.0
    %410 = vmatpush1.msra.mxu0 %v227
    %411 = vmatprep.subr.mxu0 0.0
    %412 = vmatpush1.msra.mxu0 %v228
    %413 = vmatprep.subr.mxu0 0.0
    %414 = vmatpush1.msra.mxu0 %v229
    %415 = vmatprep.subr.mxu0 0.0
    %416 = vmatpush1.msra.mxu0 %v230
    %417 = vmatprep.subr.mxu0 0.0
    %418 = vmatpush1.msra.mxu0 %v231
    %419 = vmatprep.subr.mxu0 0.0
    %420 = vmatpush1.msra.mxu0 %v232
    %421 = vmatprep.subr.mxu0 0.0
    %422 = vmatpush1.msra.mxu0 %v233
    %423 = vmatprep.subr.mxu0 0.0
    %424 = vmatpush1.msra.mxu0 %v234
    %425 = vmatprep.subr.mxu0 0.0
    %426 = vmatpush1.msra.mxu0 %v235
    %427 = vmatprep.subr.mxu0 0.0
    %428 = vmatpush1.msra.mxu0 %v236
    %429 = vmatprep.subr.mxu0 0.0
    %430 = vmatpush1.msra.mxu0 %v237
    %431 = vmatprep.subr.mxu0 0.0
    %432 = vmatpush1.msra.mxu0 %v238
    %433 = vmatprep.subr.mxu0 0.0
    %434 = vmatpush1.msra.mxu0 %v239
    %435 = vmatprep.subr.mxu0 0.0
    %436 = vmatpush1.msra.mxu0 %v240
    %437 = vmatprep.subr.mxu0 0.0
    %438 = vmatpush1.msra.mxu0 %v241
    %439 = vmatprep.subr.mxu0 0.0
    %440 = vmatpush1.msra.mxu0 %v242
    %441 = vmatprep.subr.mxu0 0.0
    %442 = vmatpush1.msra.mxu0 %v243
    %443 = vmatprep.subr.mxu0 0.0
    %444 = vmatpush1.msra.mxu0 %v244
    %445 = vmatprep.subr.mxu0 0.0
    %446 = vmatpush1.msra.mxu0 %v245
    %447 = vmatprep.subr.mxu0 0.0
    %448 = vmatpush1.msra.mxu0 %v246
    %449 = vmatprep.subr.mxu0 0.0
    %450 = vmatpush1.msra.mxu0 %v247
    %451 = vmatprep.subr.mxu0 0.0
    %452 = vmatpush1.msra.mxu0 %v248
    %453 = vmatprep.subr.mxu0 0.0
    %454 = vmatpush1.msra.mxu0 %v249
    %455 = vmatprep.subr.mxu0 0.0
    %456 = vmatpush1.msra.mxu0 %v250
    %457 = vmatprep.subr.mxu0 0.0
    %458 = vmatpush1.msra.mxu0 %v251
    %459 = vmatprep.subr.mxu0 0.0
    %460 = vmatpush1.msra.mxu0 %v252
    %461 = vmatprep.subr.mxu0 0.0
    %462 = vmatpush1.msra.mxu0 %v253
    %463 = vmatprep.subr.mxu0 0.0
    %464 = vmatpush1.msra.mxu0 %v254
    %465 = vmatprep.mubr.f32.mxu0 %v178
    %466 = vmatmul.mubr.f32.gmra.mrb[0].mxu0 %v177
    %v467 = vpop.f32.mrb[0].mxu0
    %v468 = vadd.f32 %v393, %v467
    %v469 = vpop.f32.mrb[0].mxu0
    %470 = vmatprep.mubr.f32.mxu0 %v186
    %471 = vmatmul.mubr.f32.gmra.mrb[0].mxu0 %v185
    %v472 = vpop.f32.mrb[0].mxu0
    %v473 = vadd.f32 %v398, %v472
    %v474 = vpop.f32.mrb[0].mxu0
    %475 = vdwg.mxu0
    %476 = vmatprep.subr.mxu0 0.0
    %477 = vmatpush1.msra.mxu0 %v255
    %478 = vmatprep.subr.mxu0 0.0
    %479 = vmatpush1.msra.mxu0 %v256
    %480 = vmatprep.subr.mxu0 0.0
    %481 = vmatpush1.msra.mxu0 %v257
    %482 = vmatprep.subr.mxu0 0.0
    %483 = vmatpush1.msra.mxu0 %v258
    %484 = vmatprep.subr.mxu0 0.0
    %485 = vmatpush1.msra.mxu0 %v259
    %486 = vmatprep.subr.mxu0 0.0
    %487 = vmatpush1.msra.mxu0 %v260
    %488 = vmatprep.subr.mxu0 0.0
    %489 = vmatpush1.msra.mxu0 %v261
    %490 = vmatprep.subr.mxu0 0.0
    %491 = vmatpush1.msra.mxu0 %v262
    %492 = vmatprep.subr.mxu0 0.0
    %493 = vmatpush1.msra.mxu0 %v263
    %494 = vmatprep.subr.mxu0 0.0
    %495 = vmatpush1.msra.mxu0 %v264
    %496 = vmatprep.subr.mxu0 0.0
    %497 = vmatpush1.msra.mxu0 %v265
    %498 = vmatprep.subr.mxu0 0.0
    %499 = vmatpush1.msra.mxu0 %v266
    %500 = vmatprep.subr.mxu0 0.0
    %501 = vmatpush1.msra.mxu0 %v267
    %502 = vmatprep.subr.mxu0 0.0
    %503 = vmatpush1.msra.mxu0 %v268
    %504 = vmatprep.subr.mxu0 0.0
    %505 = vmatpush1.msra.mxu0 %v269
    %506 = vmatprep.subr.mxu0 0.0
    %507 = vmatpush1.msra.mxu0 %v270
    %508 = vmatprep.subr.mxu0 0.0
    %509 = vmatpush1.msra.mxu0 %v271
    %510 = vmatprep.subr.mxu0 0.0
    %511 = vmatpush1.msra.mxu0 %v272
    %512 = vmatprep.subr.mxu0 0.0
    %513 = vmatpush1.msra.mxu0 %v273
    %514 = vmatprep.subr.mxu0 0.0
    %515 = vmatpush1.msra.mxu0 %v274
    %516 = vmatprep.subr.mxu0 0.0
    %517 = vmatpush1.msra.mxu0 %v275
    %518 = vmatprep.subr.mxu0 0.0
    %519 = vmatpush1.msra.mxu0 %v276
    %520 = vmatprep.subr.mxu0 0.0
    %521 = vmatpush1.msra.mxu0 %v277
    %522 = vmatprep.subr.mxu0 0.0
    %523 = vmatpush1.msra.mxu0 %v278
    %524 = vmatprep.subr.mxu0 0.0
    %525 = vmatpush1.msra.mxu0 %v279
    %526 = vmatprep.subr.mxu0 0.0
    %527 = vmatpush1.msra.mxu0 %v280
    %528 = vmatprep.subr.mxu0 0.0
    %529 = vmatpush1.msra.mxu0 %v281
    %530 = vmatprep.subr.mxu0 0.0
    %531 = vmatpush1.msra.mxu0 %v282
    %532 = vmatprep.subr.mxu0 0.0
    %533 = vmatpush1.msra.mxu0 %v283
    %534 = vmatprep.subr.mxu0 0.0
    %535 = vmatpush1.msra.mxu0 %v284
    %536 = vmatprep.subr.mxu0 0.0
    %537 = vmatpush1.msra.mxu0 %v285
    %538 = vmatprep.subr.mxu0 0.0
    %539 = vmatpush1.msra.mxu0 %v286
    %540 = vmatprep.mubr.f32.mxu0 %v180
    %541 = vmatmul.mubr.f32.gmra.mrb[0].mxu0 %v179
    %v542 = vpop.f32.mrb[0].mxu0
    %v543 = vadd.f32 %v468, %v542
    %v544 = vpop.f32.mrb[0].mxu0
    %545 = vmatprep.mubr.f32.mxu0 %v188
    %546 = vmatmul.mubr.f32.gmra.mrb[0].mxu0 %v187
    %v547 = vpop.f32.mrb[0].mxu0
    %v548 = vadd.f32 %v473, %v547
    %v549 = vpop.f32.mrb[0].mxu0
    %550 = vdwg.mxu0
    %551 = vmatprep.subr.mxu0 0.0
    %552 = vmatpush1.msra.mxu0 %v287
    %553 = vmatprep.subr.mxu0 0.0
    %554 = vmatpush1.msra.mxu0 %v288
    %555 = vmatprep.subr.mxu0 0.0
    %556 = vmatpush1.msra.mxu0 %v289
    %557 = vmatprep.subr.mxu0 0.0
    %558 = vmatpush1.msra.mxu0 %v290
    %559 = vmatprep.subr.mxu0 0.0
    %560 = vmatpush1.msra.mxu0 %v291
    %561 = vmatprep.subr.mxu0 0.0
    %562 = vmatpush1.msra.mxu0 %v292
    %563 = vmatprep.subr.mxu0 0.0
    %564 = vmatpush1.msra.mxu0 %v293
    %565 = vmatprep.subr.mxu0 0.0
    %566 = vmatpush1.msra.mxu0 %v294
    %567 = vmatprep.subr.mxu0 0.0
    %568 = vmatpush1.msra.mxu0 %v295
    %569 = vmatprep.subr.mxu0 0.0
    %570 = vmatpush1.msra.mxu0 %v296
    %571 = vmatprep.subr.mxu0 0.0
    %572 = vmatpush1.msra.mxu0 %v297
    %573 = vmatprep.subr.mxu0 0.0
    %574 = vmatpush1.msra.mxu0 %v298
    %575 = vmatprep.subr.mxu0 0.0
    %576 = vmatpush1.msra.mxu0 %v299
    %577 = vmatprep.subr.mxu0 0.0
    %578 = vmatpush1.msra.mxu0 %v300
    %579 = vmatprep.subr.mxu0 0.0
    %580 = vmatpush1.msra.mxu0 %v301
    %581 = vmatprep.subr.mxu0 0.0
    %582 = vmatpush1.msra.mxu0 %v302
    %583 = vmatprep.subr.mxu0 0.0
    %584 = vmatpush1.msra.mxu0 %v303
    %585 = vmatprep.subr.mxu0 0.0
    %586 = vmatpush1.msra.mxu0 %v304
    %587 = vmatprep.subr.mxu0 0.0
    %588 = vmatpush1.msra.mxu0 %v305
    %589 = vmatprep.subr.mxu0 0.0
    %590 = vmatpush1.msra.mxu0 %v306
    %591 = vmatprep.subr.mxu0 0.0
    %592 = vmatpush1.msra.mxu0 %v307
    %593 = vmatprep.subr.mxu0 0.0
    %594 = vmatpush1.msra.mxu0 %v308
    %595 = vmatprep.subr.mxu0 0.0
    %596 = vmatpush1.msra.mxu0 %v309
    %597 = vmatprep.subr.mxu0 0.0
    %598 = vmatpush1.msra.mxu0 %v310
    %599 = vmatprep.subr.mxu0 0.0
    %600 = vmatpush1.msra.mxu0 %v311
    %601 = vmatprep.subr.mxu0 0.0
    %602 = vmatpush1.msra.mxu0 %v312
    %603 = vmatprep.subr.mxu0 0.0
    %604 = vmatpush1.msra.mxu0 %v313
    %605 = vmatprep.subr.mxu0 0.0
    %606 = vmatpush1.msra.mxu0 %v314
    %607 = vmatprep.subr.mxu0 0.0
    %608 = vmatpush1.msra.mxu0 %v315
    %609 = vmatprep.subr.mxu0 0.0
    %610 = vmatpush1.msra.mxu0 %v316
    %611 = vmatprep.subr.mxu0 0.0
    %612 = vmatpush1.msra.mxu0 %v317
    %613 = vmatprep.subr.mxu0 0.0
    %614 = vmatpush1.msra.mxu0 %v318
    %615 = vmatprep.mubr.f32.mxu0 %v182
    %616 = vmatmul.mubr.f32.gmra.mrb[0].mxu0 %v181
    %v617 = vpop.f32.mrb[0].mxu0
    %v618 = vadd.f32 %v543, %v617
    %v619 = vpop.f32.mrb[0].mxu0
    %620 = vmatprep.mubr.f32.mxu0 %v190
    %621 = vmatmul.mubr.f32.gmra.mrb[0].mxu0 %v189
    %v622 = vpop.f32.mrb[0].mxu0
    %v623 = vadd.f32 %v548, %v622
    %v624 = vpop.f32.mrb[0].mxu0
    %625 = vdwg.mxu0
    %v626 = vld [vmem:[%s1] sm:$0xff]
    %v627 = vld [vmem:[%s1 + $0x8] sm:$0xff]
    %v628 = vld [vmem:[%s2] sm:$0xff]
    %v629 = vld [vmem:[%s2 + $0x8] sm:$0xff]
    %v630 = vld [vmem:[%s3] sm:$0xff]
    %v631 = vld [vmem:[%s3 + $0x8] sm:$0xff]
    %vm632 = vcmask 130048
    %v634 = vsel %vm632, %v626, 0
    %v637 = vsel %vm632, %v627, 0
    %639 = vmatprep.subr.mxu0 0.0
    %640 = vmatpush1.msra.mxu0 %v618
    %641 = vmatprep.subr.mxu0 0.0
    %642 = vmatpush1.msra.mxu0 %v623
    %643 = vmatprep.subr.mxu0 0.0
    %644 = vmatpush1.msra.mxu0 0.0
    %645 = vmatprep.subr.mxu0 0.0
    %646 = vmatpush1.msra.mxu0 0.0
    %647 = vmatprep.subr.mxu0 0.0
    %648 = vmatpush1.msra.mxu0 0.0
    %649 = vmatprep.subr.mxu0 0.0
    %650 = vmatpush1.msra.mxu0 0.0
    %651 = vmatprep.subr.mxu0 0.0
    %652 = vmatpush1.msra.mxu0 0.0
    %653 = vmatprep.subr.mxu0 0.0
    %654 = vmatpush1.msra.mxu0 0.0
    %655 = vmatprep.subr.mxu0 0.0
    %656 = vmatpush1.msra.mxu0 0.0
    %657 = vmatprep.subr.mxu0 0.0
    %658 = vmatpush1.msra.mxu0 0.0
    %659 = vmatprep.subr.mxu0 0.0
    %660 = vmatpush1.msra.mxu0 0.0
    %661 = vmatprep.subr.mxu0 0.0
    %662 = vmatpush1.msra.mxu0 0.0
    %663 = vmatprep.subr.mxu0 0.0
    %664 = vmatpush1.msra.mxu0 0.0
    %665 = vmatprep.subr.mxu0 0.0
    %666 = vmatpush1.msra.mxu0 0.0
    %667 = vmatprep.subr.mxu0 0.0
    %668 = vmatpush1.msra.mxu0 0.0
    %669 = vmatprep.subr.mxu0 0.0
    %670 = vmatpush1.msra.mxu0 0.0
    %671 = vmatprep.subr.mxu0 0.0
    %672 = vmatpush1.msra.mxu0 0.0
    %673 = vmatprep.subr.mxu0 0.0
    %674 = vmatpush1.msra.mxu0 0.0
    %675 = vmatprep.subr.mxu0 0.0
    %676 = vmatpush1.msra.mxu0 0.0
    %677 = vmatprep.subr.mxu0 0.0
    %678 = vmatpush1.msra.mxu0 0.0
    %679 = vmatprep.subr.mxu0 0.0
    %680 = vmatpush1.msra.mxu0 0.0
    %681 = vmatprep.subr.mxu0 0.0
    %682 = vmatpush1.msra.mxu0 0.0
    %683 = vmatprep.subr.mxu0 0.0
    %684 = vmatpush1.msra.mxu0 0.0
    %685 = vmatprep.subr.mxu0 0.0
    %686 = vmatpush1.msra.mxu0 0.0
    %687 = vmatprep.subr.mxu0 0.0
    %688 = vmatpush1.msra.mxu0 0.0
    %689 = vmatprep.subr.mxu0 0.0
    %690 = vmatpush1.msra.mxu0 0.0
    %691 = vmatprep.subr.mxu0 0.0
    %692 = vmatpush1.msra.mxu0 0.0
    %693 = vmatprep.subr.mxu0 0.0
    %694 = vmatpush1.msra.mxu0 0.0
    %695 = vmatprep.subr.mxu0 0.0
    %696 = vmatpush1.msra.mxu0 0.0
    %697 = vmatprep.subr.mxu0 0.0
    %698 = vmatpush1.msra.mxu0 0.0
    %699 = vmatprep.subr.mxu0 0.0
    %700 = vmatpush1.msra.mxu0 0.0
    %701 = vmatprep.subr.mxu0 0.0
    %702 = vmatpush1.msra.mxu0 0.0
    %703 = vmatprep.mubr.f32.mxu0 0.0
    %704 = vmatmul.mubr.f32.gmra.mrb[0].mxu0 %v634
    %v705 = vpop.f32.mrb[0].mxu0
    %v706 = vadd.f32 0.0, %v705
    %v707 = vpop.f32.mrb[0].mxu0
    %708 = vmatprep.mubr.f32.mxu0 0.0
    %709 = vmatmul.mubr.f32.gmra.mrb[0].mxu0 %v637
    %v710 = vpop.f32.mrb[0].mxu0
    %v711 = vadd.f32 0.0, %v710
    %v712 = vpop.f32.mrb[0].mxu0
    %713 = vdwg.mxu0
    %v714 = vld [vmem:[%s6] sm:$0xff]
    %v715 = vld [vmem:[%s7] sm:$0x1]
    %717 = vset.pattern.permute.xlu0 0
    %718 = vperm.xlu0 %717, %v630
    %v719 = vpop.permute.xlu0 %718
    %722 = vset.pattern.permute.xlu0 0
    %723 = vperm.xlu0 %722, %v631
    %v724 = vpop.permute.xlu0 %723
    %v727 = vlaneseq
    %v728 = vshrl.u32 %v727, 7
    %v729 = vsub.s32 0, %v728
    %v730 = vrot.slane %v715, %v729
    %v732 = vmul.f32 %v719, %v730
    %v733 = vmul.f32 %v724, %v730
    %vm734 = vcmask 64512
    %v736 = vsel %vm734, %v628, 0
    %v739 = vsel %vm734, %v629, 0
    %741 = vmatprep.subr.mxu0 0.0
    %742 = vmatpush1.msra.mxu0 %v714
    %743 = vmatprep.subr.mxu0 0.0
    %744 = vmatpush1.msra.mxu0 0.0
    %745 = vmatprep.subr.mxu0 0.0
    %746 = vmatpush1.msra.mxu0 0.0
    %747 = vmatprep.subr.mxu0 0.0
    %748 = vmatpush1.msra.mxu0 0.0
    %749 = vmatprep.subr.mxu0 0.0
    %750 = vmatpush1.msra.mxu0 0.0
    %751 = vmatprep.subr.mxu0 0.0
    %752 = vmatpush1.msra.mxu0 0.0
    %753 = vmatprep.subr.mxu0 0.0
    %754 = vmatpush1.msra.mxu0 0.0
    %755 = vmatprep.subr.mxu0 0.0
    %756 = vmatpush1.msra.mxu0 0.0
    %757 = vmatprep.subr.mxu0 0.0
    %758 = vmatpush1.msra.mxu0 0.0
    %759 = vmatprep.subr.mxu0 0.0
    %760 = vmatpush1.msra.mxu0 0.0
    %761 = vmatprep.subr.mxu0 0.0
    %762 = vmatpush1.msra.mxu0 0.0
    %763 = vmatprep.subr.mxu0 0.0
    %764 = vmatpush1.msra.mxu0 0.0
    %765 = vmatprep.subr.mxu0 0.0
    %766 = vmatpush1.msra.mxu0 0.0
    %767 = vmatprep.subr.mxu0 0.0
    %768 = vmatpush1.msra.mxu0 0.0
    %769 = vmatprep.subr.mxu0 0.0
    %770 = vmatpush1.msra.mxu0 0.0
    %771 = vmatprep.subr.mxu0 0.0
    %772 = vmatpush1.msra.mxu0 0.0
    %773 = vmatprep.subr.mxu0 0.0
    %774 = vmatpush1.msra.mxu0 0.0
    %775 = vmatprep.subr.mxu0 0.0
    %776 = vmatpush1.msra.mxu0 0.0
    %777 = vmatprep.subr.mxu0 0.0
    %778 = vmatpush1.msra.mxu0 0.0
    %779 = vmatprep.subr.mxu0 0.0
    %780 = vmatpush1.msra.mxu0 0.0
    %781 = vmatprep.subr.mxu0 0.0
    %782 = vmatpush1.msra.mxu0 0.0
    %783 = vmatprep.subr.mxu0 0.0
    %784 = vmatpush1.msra.mxu0 0.0
    %785 = vmatprep.subr.mxu0 0.0
    %786 = vmatpush1.msra.mxu0 0.0
    %787 = vmatprep.subr.mxu0 0.0
    %788 = vmatpush1.msra.mxu0 0.0
    %789 = vmatprep.subr.mxu0 0.0
    %790 = vmatpush1.msra.mxu0 0.0
    %791 = vmatprep.subr.mxu0 0.0
    %792 = vmatpush1.msra.mxu0 0.0
    %793 = vmatprep.subr.mxu0 0.0
    %794 = vmatpush1.msra.mxu0 0.0
    %795 = vmatprep.subr.mxu0 0.0
    %796 = vmatpush1.msra.mxu0 0.0
    %797 = vmatprep.subr.mxu0 0.0
    %798 = vmatpush1.msra.mxu0 0.0
    %799 = vmatprep.subr.mxu0 0.0
    %800 = vmatpush1.msra.mxu0 0.0
    %801 = vmatprep.subr.mxu0 0.0
    %802 = vmatpush1.msra.mxu0 0.0
    %803 = vmatprep.subr.mxu0 0.0
    %804 = vmatpush1.msra.mxu0 0.0
    %805 = vmatprep.mubr.f32.mxu0 0.0
    %806 = vmatmul.mubr.f32.gmra.mrb[0].mxu0 %v736
    %v807 = vpop.f32.mrb[0].mxu0
    %v808 = vadd.f32 %v732, %v807
    %v809 = vpop.f32.mrb[0].mxu0
    %810 = vmatprep.mubr.f32.mxu0 0.0
    %811 = vmatmul.mubr.f32.gmra.mrb[0].mxu0 %v739
    %v812 = vpop.f32.mrb[0].mxu0
    %v813 = vadd.f32 %v733, %v812
    %v814 = vpop.f32.mrb[0].mxu0
    %815 = vdwg.mxu0
    %v816 = vld [vmem:[#allocation7] sm:$0xff]
    %v817 = vld [vmem:[#allocation7 + $0x8] sm:$0xff]
    %v818 = vld [vmem:[#allocation7 + $0x10] sm:$0xff]
    %v819 = vld [vmem:[#allocation7 + $0x18] sm:$0xff]
    %v820 = vld [vmem:[#allocation7 + $0x20] sm:$0xff]
    %v821 = vld [vmem:[#allocation7 + $0x28] sm:$0xff]
    %v822 = vld [vmem:[#allocation7 + $0x30] sm:$0xff]
    %v823 = vld [vmem:[#allocation7 + $0x38] sm:$0xff]
    %v824 = vld [vmem:[#allocation7 + $0x40] sm:$0xff]
    %v825 = vld [vmem:[#allocation7 + $0x48] sm:$0xff]
    %v826 = vld [vmem:[#allocation7 + $0x50] sm:$0xff]
    %v827 = vld [vmem:[#allocation7 + $0x58] sm:$0xff]
    %v828 = vld [vmem:[#allocation7 + $0x60] sm:$0xff]
    %v829 = vld [vmem:[#allocation7 + $0x68] sm:$0xff]
    %v830 = vld [vmem:[#allocation7 + $0x70] sm:$0xff]
    %v831 = vld [vmem:[#allocation7 + $0x78] sm:$0xff]
    %v832 = vld [vmem:[#allocation8] sm:$0xff]
    %v833 = vld [vmem:[#allocation8 + $0x8] sm:$0xff]
    %v834 = vld [vmem:[#allocation8 + $0x10] sm:$0xff]
    %v835 = vld [vmem:[#allocation8 + $0x18] sm:$0xff]
    %v836 = vld [vmem:[#allocation8 + $0x20] sm:$0xff]
    %v837 = vld [vmem:[#allocation8 + $0x28] sm:$0xff]
    %v838 = vld [vmem:[#allocation8 + $0x30] sm:$0xff]
    %v839 = vld [vmem:[#allocation8 + $0x38] sm:$0xff]
    %v840 = vld [vmem:[#allocation8 + $0x40] sm:$0xff]
    %v841 = vld [vmem:[#allocation8 + $0x48] sm:$0xff]
    %v842 = vld [vmem:[#allocation8 + $0x50] sm:$0xff]
    %v843 = vld [vmem:[#allocation8 + $0x58] sm:$0xff]
    %v844 = vld [vmem:[#allocation8 + $0x60] sm:$0xff]
    %v845 = vld [vmem:[#allocation8 + $0x68] sm:$0xff]
    %v846 = vld [vmem:[#allocation8 + $0x70] sm:$0xff]
    %v847 = vld [vmem:[#allocation8 + $0x78] sm:$0xff]
    %848 = vmatprep.subr.mxu0 0.0
    %849 = vmatpush1.msra.mxu0 %v832
    %850 = vmatprep.subr.mxu0 0.0
    %851 = vmatpush1.msra.mxu0 %v833
    %852 = vmatprep.subr.mxu0 0.0
    %853 = vmatpush1.msra.mxu0 %v834
    %854 = vmatprep.subr.mxu0 0.0
    %855 = vmatpush1.msra.mxu0 %v835
    %856 = vmatprep.subr.mxu0 0.0
    %857 = vmatpush1.msra.mxu0 %v836
    %858 = vmatprep.subr.mxu0 0.0
    %859 = vmatpush1.msra.mxu0 %v837
    %860 = vmatprep.subr.mxu0 0.0
    %861 = vmatpush1.msra.mxu0 %v838
    %862 = vmatprep.subr.mxu0 0.0
    %863 = vmatpush1.msra.mxu0 %v839
    %864 = vmatprep.subr.mxu0 0.0
    %865 = vmatpush1.msra.mxu0 %v840
    %866 = vmatprep.subr.mxu0 0.0
    %867 = vmatpush1.msra.mxu0 %v841
    %868 = vmatprep.subr.mxu0 0.0
    %869 = vmatpush1.msra.mxu0 %v842
    %870 = vmatprep.subr.mxu0 0.0
    %871 = vmatpush1.msra.mxu0 %v843
    %872 = vmatprep.subr.mxu0 0.0
    %873 = vmatpush1.msra.mxu0 %v844
    %874 = vmatprep.subr.mxu0 0.0
    %875 = vmatpush1.msra.mxu0 %v845
    %876 = vmatprep.subr.mxu0 0.0
    %877 = vmatpush1.msra.mxu0 %v846
    %878 = vmatprep.subr.mxu0 0.0
    %879 = vmatpush1.msra.mxu0 %v847
    %880 = vmatprep.subr.mxu0 0.0
    %881 = vmatpush1.msra.mxu0 0.0
    %882 = vmatprep.subr.mxu0 0.0
    %883 = vmatpush1.msra.mxu0 0.0
    %884 = vmatprep.subr.mxu0 0.0
    %885 = vmatpush1.msra.mxu0 0.0
    %886 = vmatprep.subr.mxu0 0.0
    %887 = vmatpush1.msra.mxu0 0.0
    %888 = vmatprep.subr.mxu0 0.0
    %889 = vmatpush1.msra.mxu0 0.0
    %890 = vmatprep.subr.mxu0 0.0
    %891 = vmatpush1.msra.mxu0 0.0
    %892 = vmatprep.subr.mxu0 0.0
    %893 = vmatpush1.msra.mxu0 0.0
    %894 = vmatprep.subr.mxu0 0.0
    %895 = vmatpush1.msra.mxu0 0.0
    %896 = vmatprep.subr.mxu0 0.0
    %897 = vmatpush1.msra.mxu0 0.0
    %898 = vmatprep.subr.mxu0 0.0
    %899 = vmatpush1.msra.mxu0 0.0
    %900 = vmatprep.subr.mxu0 0.0
    %901 = vmatpush1.msra.mxu0 0.0
    %902 = vmatprep.subr.mxu0 0.0
    %903 = vmatpush1.msra.mxu0 0.0
    %904 = vmatprep.subr.mxu0 0.0
    %905 = vmatpush1.msra.mxu0 0.0
    %906 = vmatprep.subr.mxu0 0.0
    %907 = vmatpush1.msra.mxu0 0.0
    %908 = vmatprep.subr.mxu0 0.0
    %909 = vmatpush1.msra.mxu0 0.0
    %910 = vmatprep.subr.mxu0 0.0
    %911 = vmatpush1.msra.mxu0 0.0
    %912 = vmatprep.mubr.f32.mxu0 0.0
    %913 = vmatmul.mubr.f32.gmra.mrb[0].mxu0 %v808
    %v914 = vpop.f32.mrb[0].mxu0
    %v915 = vadd.f32 0.0, %v914
    %v916 = vpop.f32.mrb[0].mxu0
    %917 = vmatprep.mubr.f32.mxu0 0.0
    %918 = vmatmul.mubr.f32.gmra.mrb[0].mxu0 %v813
    %v919 = vpop.f32.mrb[0].mxu0
    %v920 = vadd.f32 0.0, %v919
    %v921 = vpop.f32.mrb[0].mxu0
    %922 = vdwg.mxu0
    %923 = vmatprep.subr.mxu0 0.0
    %924 = vmatpush1.msra.mxu0 %v816
    %925 = vmatprep.subr.mxu0 0.0
    %926 = vmatpush1.msra.mxu0 %v817
    %927 = vmatprep.subr.mxu0 0.0
    %928 = vmatpush1.msra.mxu0 %v818
    %929 = vmatprep.subr.mxu0 0.0
    %930 = vmatpush1.msra.mxu0 %v819
    %931 = vmatprep.subr.mxu0 0.0
    %932 = vmatpush1.msra.mxu0 %v820
    %933 = vmatprep.subr.mxu0 0.0
    %934 = vmatpush1.msra.mxu0 %v821
    %935 = vmatprep.subr.mxu0 0.0
    %936 = vmatpush1.msra.mxu0 %v822
    %937 = vmatprep.subr.mxu0 0.0
    %938 = vmatpush1.msra.mxu0 %v823
    %939 = vmatprep.subr.mxu0 0.0
    %940 = vmatpush1.msra.mxu0 %v824
    %941 = vmatprep.subr.mxu0 0.0
    %942 = vmatpush1.msra.mxu0 %v825
    %943 = vmatprep.subr.mxu0 0.0
    %944 = vmatpush1.msra.mxu0 %v826
    %945 = vmatprep.subr.mxu0 0.0
    %946 = vmatpush1.msra.mxu0 %v827
    %947 = vmatprep.subr.mxu0 0.0
    %948 = vmatpush1.msra.mxu0 %v828
    %949 = vmatprep.subr.mxu0 0.0
    %950 = vmatpush1.msra.mxu0 %v829
    %951 = vmatprep.subr.mxu0 0.0
    %952 = vmatpush1.msra.mxu0 %v830
    %953 = vmatprep.subr.mxu0 0.0
    %954 = vmatpush1.msra.mxu0 %v831
    %955 = vmatprep.subr.mxu0 0.0
    %956 = vmatpush1.msra.mxu0 0.0
    %957 = vmatprep.subr.mxu0 0.0
    %958 = vmatpush1.msra.mxu0 0.0
    %959 = vmatprep.subr.mxu0 0.0
    %960 = vmatpush1.msra.mxu0 0.0
    %961 = vmatprep.subr.mxu0 0.0
    %962 = vmatpush1.msra.mxu0 0.0
    %963 = vmatprep.subr.mxu0 0.0
    %964 = vmatpush1.msra.mxu0 0.0
    %965 = vmatprep.subr.mxu0 0.0
    %966 = vmatpush1.msra.mxu0 0.0
    %967 = vmatprep.subr.mxu0 0.0
    %968 = vmatpush1.msra.mxu0 0.0
    %969 = vmatprep.subr.mxu0 0.0
    %970 = vmatpush1.msra.mxu0 0.0
    %971 = vmatprep.subr.mxu0 0.0
    %972 = vmatpush1.msra.mxu0 0.0
    %973 = vmatprep.subr.mxu0 0.0
    %974 = vmatpush1.msra.mxu0 0.0
    %975 = vmatprep.subr.mxu0 0.0
    %976 = vmatpush1.msra.mxu0 0.0
    %977 = vmatprep.subr.mxu0 0.0
    %978 = vmatpush1.msra.mxu0 0.0
    %979 = vmatprep.subr.mxu0 0.0
    %980 = vmatpush1.msra.mxu0 0.0
    %981 = vmatprep.subr.mxu0 0.0
    %982 = vmatpush1.msra.mxu0 0.0
    %983 = vmatprep.subr.mxu0 0.0
    %984 = vmatpush1.msra.mxu0 0.0
    %985 = vmatprep.subr.mxu0 0.0
    %986 = vmatpush1.msra.mxu0 0.0
    %987 = vmatprep.mubr.f32.mxu0 0.0
    %988 = vmatmul.mubr.f32.gmra.mrb[0].mxu0 %v706
    %v989 = vpop.f32.mrb[0].mxu0
    %v990 = vadd.f32 %v915, %v989
    %v991 = vpop.f32.mrb[0].mxu0
    %992 = vmatprep.mubr.f32.mxu0 0.0
    %993 = vmatmul.mubr.f32.gmra.mrb[0].mxu0 %v711
    %v994 = vpop.f32.mrb[0].mxu0
    %v995 = vadd.f32 %v920, %v994
    %v996 = vpop.f32.mrb[0].mxu0
    %997 = vdwg.mxu0
    %v998 = vld [vmem:[%s10] sm:$0x1]
    %v1000 = vlaneseq
    %v1001 = vshrl.u32 %v1000, 7
    %v1002 = vsub.s32 0, %v1001
    %v1003 = vrot.slane %v998, %v1002
    %v1005 = vadd.f32 %v990, %v1003
    %v1006 = vadd.f32 %v995, %v1003
    %v1007 = vmax.f32 %v1005, 0.0
    %v1008 = vmax.f32 %v1006, 0.0
    %v1009 = vld [vmem:[#allocation10] sm:$0xff]
    %v1010 = vld [vmem:[#allocation10 + $0x8] sm:$0xff]
    %v1011 = vld [vmem:[#allocation10 + $0x10] sm:$0xff]
    %v1012 = vld [vmem:[#allocation10 + $0x18] sm:$0xff]
    %v1013 = vld [vmem:[#allocation10 + $0x20] sm:$0xff]
    %v1014 = vld [vmem:[#allocation10 + $0x28] sm:$0xff]
    %v1015 = vld [vmem:[#allocation10 + $0x30] sm:$0xff]
    %v1016 = vld [vmem:[#allocation10 + $0x38] sm:$0xff]
    %v1017 = vld [vmem:[#allocation10 + $0x40] sm:$0xff]
    %v1018 = vld [vmem:[#allocation10 + $0x48] sm:$0xff]
    %v1019 = vld [vmem:[#allocation10 + $0x50] sm:$0xff]
    %v1020 = vld [vmem:[#allocation10 + $0x58] sm:$0xff]
    %v1021 = vld [vmem:[#allocation10 + $0x60] sm:$0xff]
    %v1022 = vld [vmem:[#allocation10 + $0x68] sm:$0xff]
    %v1023 = vld [vmem:[#allocation10 + $0x70] sm:$0xff]
    %v1024 = vld [vmem:[#allocation10 + $0x78] sm:$0xff]
    %v1025 = vld [vmem:[%s12] sm:$0x1]
    %v1027 = vlaneseq
    %v1028 = vshrl.u32 %v1027, 7
    %v1029 = vsub.s32 0, %v1028
    %v1030 = vrot.slane %v1025, %v1029
    %1032 = vmatprep.subr.mxu0 0.0
    %1033 = vmatpush1.msra.mxu0 %v1009
    %1034 = vmatprep.subr.mxu0 0.0
    %1035 = vmatpush1.msra.mxu0 %v1010
    %1036 = vmatprep.subr.mxu0 0.0
    %1037 = vmatpush1.msra.mxu0 %v1011
    %1038 = vmatprep.subr.mxu0 0.0
    %1039 = vmatpush1.msra.mxu0 %v1012
    %1040 = vmatprep.subr.mxu0 0.0
    %1041 = vmatpush1.msra.mxu0 %v1013
    %1042 = vmatprep.subr.mxu0 0.0
    %1043 = vmatpush1.msra.mxu0 %v1014
    %1044 = vmatprep.subr.mxu0 0.0
    %1045 = vmatpush1.msra.mxu0 %v1015
    %1046 = vmatprep.subr.mxu0 0.0
    %1047 = vmatpush1.msra.mxu0 %v1016
    %1048 = vmatprep.subr.mxu0 0.0
    %1049 = vmatpush1.msra.mxu0 %v1017
    %1050 = vmatprep.subr.mxu0 0.0
    %1051 = vmatpush1.msra.mxu0 %v1018
    %1052 = vmatprep.subr.mxu0 0.0
    %1053 = vmatpush1.msra.mxu0 %v1019
    %1054 = vmatprep.subr.mxu0 0.0
    %1055 = vmatpush1.msra.mxu0 %v1020
    %1056 = vmatprep.subr.mxu0 0.0
    %1057 = vmatpush1.msra.mxu0 %v1021
    %1058 = vmatprep.subr.mxu0 0.0
    %1059 = vmatpush1.msra.mxu0 %v1022
    %1060 = vmatprep.subr.mxu0 0.0
    %1061 = vmatpush1.msra.mxu0 %v1023
    %1062 = vmatprep.subr.mxu0 0.0
    %1063 = vmatpush1.msra.mxu0 %v1024
    %1064 = vmatprep.subr.mxu0 0.0
    %1065 = vmatpush1.msra.mxu0 0.0
    %1066 = vmatprep.subr.mxu0 0.0
    %1067 = vmatpush1.msra.mxu0 0.0
    %1068 = vmatprep.subr.mxu0 0.0
    %1069 = vmatpush1.msra.mxu0 0.0
    %1070 = vmatprep.subr.mxu0 0.0
    %1071 = vmatpush1.msra.mxu0 0.0
    %1072 = vmatprep.subr.mxu0 0.0
    %1073 = vmatpush1.msra.mxu0 0.0
    %1074 = vmatprep.subr.mxu0 0.0
    %1075 = vmatpush1.msra.mxu0 0.0
    %1076 = vmatprep.subr.mxu0 0.0
    %1077 = vmatpush1.msra.mxu0 0.0
    %1078 = vmatprep.subr.mxu0 0.0
    %1079 = vmatpush1.msra.mxu0 0.0
    %1080 = vmatprep.subr.mxu0 0.0
    %1081 = vmatpush1.msra.mxu0 0.0
    %1082 = vmatprep.subr.mxu0 0.0
    %1083 = vmatpush1.msra.mxu0 0.0
    %1084 = vmatprep.subr.mxu0 0.0
    %1085 = vmatpush1.msra.mxu0 0.0
    %1086 = vmatprep.subr.mxu0 0.0
    %1087 = vmatpush1.msra.mxu0 0.0
    %1088 = vmatprep.subr.mxu0 0.0
    %1089 = vmatpush1.msra.mxu0 0.0
    %1090 = vmatprep.subr.mxu0 0.0
    %1091 = vmatpush1.msra.mxu0 0.0
    %1092 = vmatprep.subr.mxu0 0.0
    %1093 = vmatpush1.msra.mxu0 0.0
    %1094 = vmatprep.subr.mxu0 0.0
    %1095 = vmatpush1.msra.mxu0 0.0
    %1096 = vmatprep.mubr.f32.mxu0 0.0
    %1097 = vmatmul.mubr.f32.gmra.mrb[0].mxu0 %v1007
    %v1098 = vpop.f32.mrb[0].mxu0
    %v1099 = vadd.f32 %v1030, %v1098
    %v1100 = vpop.f32.mrb[0].mxu0
    %1101 = vmatprep.mubr.f32.mxu0 0.0
    %1102 = vmatmul.mubr.f32.gmra.mrb[0].mxu0 %v1008
    %v1103 = vpop.f32.mrb[0].mxu0
    %v1104 = vadd.f32 %v1030, %v1103
    %v1105 = vpop.f32.mrb[0].mxu0
    %1106 = vdwg.mxu0
    %v1107 = vmax.f32 %v1099, 0.0
    %v1108 = vmax.f32 %v1104, 0.0
    %1109 = vmatprep.subr.mxu0 0.0
    %1110 = vmatpush1.msra.mxu0 %v1107
    %1111 = vmatprep.subr.mxu0 0.0
    %1112 = vmatpush1.msra.mxu0 %v1108
    %1113 = vmatprep.subr.mxu0 0.0
    %1114 = vmatpush1.msra.mxu0 0.0
    %1115 = vmatprep.subr.mxu0 0.0
    %1116 = vmatpush1.msra.mxu0 0.0
    %1117 = vmatprep.subr.mxu0 0.0
    %1118 = vmatpush1.msra.mxu0 0.0
    %1119 = vmatprep.subr.mxu0 0.0
    %1120 = vmatpush1.msra.mxu0 0.0
    %1121 = vmatprep.subr.mxu0 0.0
    %1122 = vmatpush1.msra.mxu0 0.0
    %1123 = vmatprep.subr.mxu0 0.0
    %1124 = vmatpush1.msra.mxu0 0.0
    %1125 = vmatprep.subr.mxu0 0.0
    %1126 = vmatpush1.msra.mxu0 0.0
    %1127 = vmatprep.subr.mxu0 0.0
    %1128 = vmatpush1.msra.mxu0 0.0
    %1129 = vmatprep.subr.mxu0 0.0
    %1130 = vmatpush1.msra.mxu0 0.0
    %1131 = vmatprep.subr.mxu0 0.0
    %1132 = vmatpush1.msra.mxu0 0.0
    %1133 = vmatprep.subr.mxu0 0.0
    %1134 = vmatpush1.msra.mxu0 0.0
    %1135 = vmatprep.subr.mxu0 0.0
    %1136 = vmatpush1.msra.mxu0 0.0
    %1137 = vmatprep.subr.mxu0 0.0
    %1138 = vmatpush1.msra.mxu0 0.0
    %1139 = vmatprep.subr.mxu0 0.0
    %1140 = vmatpush1.msra.mxu0 0.0
    %1141 = vmatprep.subr.mxu0 0.0
    %1142 = vmatpush1.msra.mxu0 0.0
    %1143 = vmatprep.subr.mxu0 0.0
    %1144 = vmatpush1.msra.mxu0 0.0
    %1145 = vmatprep.subr.mxu0 0.0
    %1146 = vmatpush1.msra.mxu0 0.0
    %1147 = vmatprep.subr.mxu0 0.0
    %1148 = vmatpush1.msra.mxu0 0.0
    %1149 = vmatprep.subr.mxu0 0.0
    %1150 = vmatpush1.msra.mxu0 0.0
    %1151 = vmatprep.subr.mxu0 0.0
    %1152 = vmatpush1.msra.mxu0 0.0
    %1153 = vmatprep.subr.mxu0 0.0
    %1154 = vmatpush1.msra.mxu0 0.0
    %1155 = vmatprep.subr.mxu0 0.0
    %1156 = vmatpush1.msra.mxu0 0.0
    %1157 = vmatprep.subr.mxu0 0.0
    %1158 = vmatpush1.msra.mxu0 0.0
    %1159 = vmatprep.subr.mxu0 0.0
    %1160 = vmatpush1.msra.mxu0 0.0
    %1161 = vmatprep.subr.mxu0 0.0
    %1162 = vmatpush1.msra.mxu0 0.0
    %1163 = vmatprep.subr.mxu0 0.0
    %1164 = vmatpush1.msra.mxu0 0.0
    %1165 = vmatprep.subr.mxu0 0.0
    %1166 = vmatpush1.msra.mxu0 0.0
    %1167 = vmatprep.subr.mxu0 0.0
    %1168 = vmatpush1.msra.mxu0 0.0
    %1169 = vmatprep.subr.mxu0 0.0
    %1170 = vmatpush1.msra.mxu0 0.0
    %1171 = vmatprep.subr.mxu0 0.0
    %1172 = vmatpush1.msra.mxu0 0.0
    %1173 = vmatprep.mubr.f32.mxu0 0.0
    %1174 = vmatmul.mubr.f32.gmra.mrb[0].mxu0 %v634
    %v1175 = vpop.f32.mrb[0].mxu0
    %v1176 = vadd.f32 0.0, %v1175
    %v1177 = vpop.f32.mrb[0].mxu0
    %1178 = vmatprep.mubr.f32.mxu0 0.0
    %1179 = vmatmul.mubr.f32.gmra.mrb[0].mxu0 %v637
    %v1180 = vpop.f32.mrb[0].mxu0
    %v1181 = vadd.f32 0.0, %v1180
    %v1182 = vpop.f32.mrb[0].mxu0
    %1183 = vdwg.mxu0
    %v1184 = vld [vmem:[%s13] sm:$0xff]
    %v1185 = vld [vmem:[%s14] sm:$0x1]
    %v1187 = vlaneseq
    %v1188 = vshrl.u32 %v1187, 7
    %v1189 = vsub.s32 0, %v1188
    %v1190 = vrot.slane %v1185, %v1189
    %v1192 = vmul.f32 %v719, %v1190
    %v1193 = vmul.f32 %v724, %v1190
    %1194 = vmatprep.subr.mxu0 0.0
    %1195 = vmatpush1.msra.mxu0 %v1184
    %1196 = vmatprep.subr.mxu0 0.0
    %1197 = vmatpush1.msra.mxu0 0.0
    %1198 = vmatprep.subr.mxu0 0.0
    %1199 = vmatpush1.msra.mxu0 0.0
    %1200 = vmatprep.subr.mxu0 0.0
    %1201 = vmatpush1.msra.mxu0 0.0
    %1202 = vmatprep.subr.mxu0 0.0
    %1203 = vmatpush1.msra.mxu0 0.0
    %1204 = vmatprep.subr.mxu0 0.0
    %1205 = vmatpush1.msra.mxu0 0.0
    %1206 = vmatprep.subr.mxu0 0.0
    %1207 = vmatpush1.msra.mxu0 0.0
    %1208 = vmatprep.subr.mxu0 0.0
    %1209 = vmatpush1.msra.mxu0 0.0
    %1210 = vmatprep.subr.mxu0 0.0
    %1211 = vmatpush1.msra.mxu0 0.0
    %1212 = vmatprep.subr.mxu0 0.0
    %1213 = vmatpush1.msra.mxu0 0.0
    %1214 = vmatprep.subr.mxu0 0.0
    %1215 = vmatpush1.msra.mxu0 0.0
    %1216 = vmatprep.subr.mxu0 0.0
    %1217 = vmatpush1.msra.mxu0 0.0
    %1218 = vmatprep.subr.mxu0 0.0
    %1219 = vmatpush1.msra.mxu0 0.0
    %1220 = vmatprep.subr.mxu0 0.0
    %1221 = vmatpush1.msra.mxu0 0.0
    %1222 = vmatprep.subr.mxu0 0.0
    %1223 = vmatpush1.msra.mxu0 0.0
    %1224 = vmatprep.subr.mxu0 0.0
    %1225 = vmatpush1.msra.mxu0 0.0
    %1226 = vmatprep.subr.mxu0 0.0
    %1227 = vmatpush1.msra.mxu0 0.0
    %1228 = vmatprep.subr.mxu0 0.0
    %1229 = vmatpush1.msra.mxu0 0.0
    %1230 = vmatprep.subr.mxu0 0.0
    %1231 = vmatpush1.msra.mxu0 0.0
    %1232 = vmatprep.subr.mxu0 0.0
    %1233 = vmatpush1.msra.mxu0 0.0
    %1234 = vmatprep.subr.mxu0 0.0
    %1235 = vmatpush1.msra.mxu0 0.0
    %1236 = vmatprep.subr.mxu0 0.0
    %1237 = vmatpush1.msra.mxu0 0.0
    %1238 = vmatprep.subr.mxu0 0.0
    %1239 = vmatpush1.msra.mxu0 0.0
    %1240 = vmatprep.subr.mxu0 0.0
    %1241 = vmatpush1.msra.mxu0 0.0
    %1242 = vmatprep.subr.mxu0 0.0
    %1243 = vmatpush1.msra.mxu0 0.0
    %1244 = vmatprep.subr.mxu0 0.0
    %1245 = vmatpush1.msra.mxu0 0.0
    %1246 = vmatprep.subr.mxu0 0.0
    %1247 = vmatpush1.msra.mxu0 0.0
    %1248 = vmatprep.subr.mxu0 0.0
    %1249 = vmatpush1.msra.mxu0 0.0
    %1250 = vmatprep.subr.mxu0 0.0
    %1251 = vmatpush1.msra.mxu0 0.0
    %1252 = vmatprep.subr.mxu0 0.0
    %1253 = vmatpush1.msra.mxu0 0.0
    %1254 = vmatprep.subr.mxu0 0.0
    %1255 = vmatpush1.msra.mxu0 0.0
    %1256 = vmatprep.subr.mxu0 0.0
    %1257 = vmatpush1.msra.mxu0 0.0
    %1258 = vmatprep.mubr.f32.mxu0 0.0
    %1259 = vmatmul.mubr.f32.gmra.mrb[0].mxu0 %v736
    %v1260 = vpop.f32.mrb[0].mxu0
    %v1261 = vadd.f32 %v1192, %v1260
    %v1262 = vpop.f32.mrb[0].mxu0
    %1263 = vmatprep.mubr.f32.mxu0 0.0
    %1264 = vmatmul.mubr.f32.gmra.mrb[0].mxu0 %v739
    %v1265 = vpop.f32.mrb[0].mxu0
    %v1266 = vadd.f32 %v1193, %v1265
    %v1267 = vpop.f32.mrb[0].mxu0
    %1268 = vdwg.mxu0
    %v1269 = vld [vmem:[#allocation11] sm:$0xff]
    %v1270 = vld [vmem:[#allocation11 + $0x8] sm:$0xff]
    %v1271 = vld [vmem:[#allocation11 + $0x10] sm:$0xff]
    %v1272 = vld [vmem:[#allocation11 + $0x18] sm:$0xff]
    %v1273 = vld [vmem:[#allocation11 + $0x20] sm:$0xff]
    %v1274 = vld [vmem:[#allocation11 + $0x28] sm:$0xff]
    %v1275 = vld [vmem:[#allocation11 + $0x30] sm:$0xff]
    %v1276 = vld [vmem:[#allocation11 + $0x38] sm:$0xff]
    %v1277 = vld [vmem:[#allocation11 + $0x40] sm:$0xff]
    %v1278 = vld [vmem:[#allocation11 + $0x48] sm:$0xff]
    %v1279 = vld [vmem:[#allocation11 + $0x50] sm:$0xff]
    %v1280 = vld [vmem:[#allocation11 + $0x58] sm:$0xff]
    %v1281 = vld [vmem:[#allocation11 + $0x60] sm:$0xff]
    %v1282 = vld [vmem:[#allocation11 + $0x68] sm:$0xff]
    %v1283 = vld [vmem:[#allocation11 + $0x70] sm:$0xff]
    %v1284 = vld [vmem:[#allocation11 + $0x78] sm:$0xff]
    %v1285 = vld [vmem:[#allocation13] sm:$0xff]
    %v1286 = vld [vmem:[#allocation13 + $0x8] sm:$0xff]
    %v1287 = vld [vmem:[#allocation13 + $0x10] sm:$0xff]
    %v1288 = vld [vmem:[#allocation13 + $0x18] sm:$0xff]
    %v1289 = vld [vmem:[#allocation13 + $0x20] sm:$0xff]
    %v1290 = vld [vmem:[#allocation13 + $0x28] sm:$0xff]
    %v1291 = vld [vmem:[#allocation13 + $0x30] sm:$0xff]
    %v1292 = vld [vmem:[#allocation13 + $0x38] sm:$0xff]
    %v1293 = vld [vmem:[#allocation13 + $0x40] sm:$0xff]
    %v1294 = vld [vmem:[#allocation13 + $0x48] sm:$0xff]
    %v1295 = vld [vmem:[#allocation13 + $0x50] sm:$0xff]
    %v1296 = vld [vmem:[#allocation13 + $0x58] sm:$0xff]
    %v1297 = vld [vmem:[#allocation13 + $0x60] sm:$0xff]
    %v1298 = vld [vmem:[#allocation13 + $0x68] sm:$0xff]
    %v1299 = vld [vmem:[#allocation13 + $0x70] sm:$0xff]
    %v1300 = vld [vmem:[#allocation13 + $0x78] sm:$0xff]
    %1301 = vmatprep.subr.mxu0 0.0
    %1302 = vmatpush1.msra.mxu0 %v1285
    %1303 = vmatprep.subr.mxu0 0.0
    %1304 = vmatpush1.msra.mxu0 %v1286
    %1305 = vmatprep.subr.mxu0 0.0
    %1306 = vmatpush1.msra.mxu0 %v1287
    %1307 = vmatprep.subr.mxu0 0.0
    %1308 = vmatpush1.msra.mxu0 %v1288
    %1309 = vmatprep.subr.mxu0 0.0
    %1310 = vmatpush1.msra.mxu0 %v1289
    %1311 = vmatprep.subr.mxu0 0.0
    %1312 = vmatpush1.msra.mxu0 %v1290
    %1313 = vmatprep.subr.mxu0 0.0
    %1314 = vmatpush1.msra.mxu0 %v1291
    %1315 = vmatprep.subr.mxu0 0.0
    %1316 = vmatpush1.msra.mxu0 %v1292
    %1317 = vmatprep.subr.mxu0 0.0
    %1318 = vmatpush1.msra.mxu0 %v1293
    %1319 = vmatprep.subr.mxu0 0.0
    %1320 = vmatpush1.msra.mxu0 %v1294
    %1321 = vmatprep.subr.mxu0 0.0
    %1322 = vmatpush1.msra.mxu0 %v1295
    %1323 = vmatprep.subr.mxu0 0.0
    %1324 = vmatpush1.msra.mxu0 %v1296
    %1325 = vmatprep.subr.mxu0 0.0
    %1326 = vmatpush1.msra.mxu0 %v1297
    %1327 = vmatprep.subr.mxu0 0.0
    %1328 = vmatpush1.msra.mxu0 %v1298
    %1329 = vmatprep.subr.mxu0 0.0
    %1330 = vmatpush1.msra.mxu0 %v1299
    %1331 = vmatprep.subr.mxu0 0.0
    %1332 = vmatpush1.msra.mxu0 %v1300
    %1333 = vmatprep.subr.mxu0 0.0
    %1334 = vmatpush1.msra.mxu0 0.0
    %1335 = vmatprep.subr.mxu0 0.0
    %1336 = vmatpush1.msra.mxu0 0.0
    %1337 = vmatprep.subr.mxu0 0.0
    %1338 = vmatpush1.msra.mxu0 0.0
    %1339 = vmatprep.subr.mxu0 0.0
    %1340 = vmatpush1.msra.mxu0 0.0
    %1341 = vmatprep.subr.mxu0 0.0
    %1342 = vmatpush1.msra.mxu0 0.0
    %1343 = vmatprep.subr.mxu0 0.0
    %1344 = vmatpush1.msra.mxu0 0.0
    %1345 = vmatprep.subr.mxu0 0.0
    %1346 = vmatpush1.msra.mxu0 0.0
    %1347 = vmatprep.subr.mxu0 0.0
    %1348 = vmatpush1.msra.mxu0 0.0
    %1349 = vmatprep.subr.mxu0 0.0
    %1350 = vmatpush1.msra.mxu0 0.0
    %1351 = vmatprep.subr.mxu0 0.0
    %1352 = vmatpush1.msra.mxu0 0.0
    %1353 = vmatprep.subr.mxu0 0.0
    %1354 = vmatpush1.msra.mxu0 0.0
    %1355 = vmatprep.subr.mxu0 0.0
    %1356 = vmatpush1.msra.mxu0 0.0
    %1357 = vmatprep.subr.mxu0 0.0
    %1358 = vmatpush1.msra.mxu0 0.0
    %1359 = vmatprep.subr.mxu0 0.0
    %1360 = vmatpush1.msra.mxu0 0.0
    %1361 = vmatprep.subr.mxu0 0.0
    %1362 = vmatpush1.msra.mxu0 0.0
    %1363 = vmatprep.subr.mxu0 0.0
    %1364 = vmatpush1.msra.mxu0 0.0
    %1365 = vmatprep.mubr.f32.mxu0 0.0
    %1366 = vmatmul.mubr.f32.gmra.mrb[0].mxu0 %v1261
    %v1367 = vpop.f32.mrb[0].mxu0
    %v1368 = vadd.f32 0.0, %v1367
    %v1369 = vpop.f32.mrb[0].mxu0
    %1370 = vmatprep.mubr.f32.mxu0 0.0
    %1371 = vmatmul.mubr.f32.gmra.mrb[0].mxu0 %v1266
    %v1372 = vpop.f32.mrb[0].mxu0
    %v1373 = vadd.f32 0.0, %v1372
    %v1374 = vpop.f32.mrb[0].mxu0
    %1375 = vdwg.mxu0
    %1376 = vmatprep.subr.mxu0 0.0
    %1377 = vmatpush1.msra.mxu0 %v1269
    %1378 = vmatprep.subr.mxu0 0.0
    %1379 = vmatpush1.msra.mxu0 %v1270
    %1380 = vmatprep.subr.mxu0 0.0
    %1381 = vmatpush1.msra.mxu0 %v1271
    %1382 = vmatprep.subr.mxu0 0.0
    %1383 = vmatpush1.msra.mxu0 %v1272
    %1384 = vmatprep.subr.mxu0 0.0
    %1385 = vmatpush1.msra.mxu0 %v1273
    %1386 = vmatprep.subr.mxu0 0.0
    %1387 = vmatpush1.msra.mxu0 %v1274
    %1388 = vmatprep.subr.mxu0 0.0
    %1389 = vmatpush1.msra.mxu0 %v1275
    %1390 = vmatprep.subr.mxu0 0.0
    %1391 = vmatpush1.msra.mxu0 %v1276
    %1392 = vmatprep.subr.mxu0 0.0
    %1393 = vmatpush1.msra.mxu0 %v1277
    %1394 = vmatprep.subr.mxu0 0.0
    %1395 = vmatpush1.msra.mxu0 %v1278
    %1396 = vmatprep.subr.mxu0 0.0
    %1397 = vmatpush1.msra.mxu0 %v1279
    %1398 = vmatprep.subr.mxu0 0.0
    %1399 = vmatpush1.msra.mxu0 %v1280
    %1400 = vmatprep.subr.mxu0 0.0
    %1401 = vmatpush1.msra.mxu0 %v1281
    %1402 = vmatprep.subr.mxu0 0.0
    %1403 = vmatpush1.msra.mxu0 %v1282
    %1404 = vmatprep.subr.mxu0 0.0
    %1405 = vmatpush1.msra.mxu0 %v1283
    %1406 = vmatprep.subr.mxu0 0.0
    %1407 = vmatpush1.msra.mxu0 %v1284
    %1408 = vmatprep.subr.mxu0 0.0
    %1409 = vmatpush1.msra.mxu0 0.0
    %1410 = vmatprep.subr.mxu0 0.0
    %1411 = vmatpush1.msra.mxu0 0.0
    %1412 = vmatprep.subr.mxu0 0.0
    %1413 = vmatpush1.msra.mxu0 0.0
    %1414 = vmatprep.subr.mxu0 0.0
    %1415 = vmatpush1.msra.mxu0 0.0
    %1416 = vmatprep.subr.mxu0 0.0
    %1417 = vmatpush1.msra.mxu0 0.0
    %1418 = vmatprep.subr.mxu0 0.0
    %1419 = vmatpush1.msra.mxu0 0.0
    %1420 = vmatprep.subr.mxu0 0.0
    %1421 = vmatpush1.msra.mxu0 0.0
    %1422 = vmatprep.subr.mxu0 0.0
    %1423 = vmatpush1.msra.mxu0 0.0
    %1424 = vmatprep.subr.mxu0 0.0
    %1425 = vmatpush1.msra.mxu0 0.0
    %1426 = vmatprep.subr.mxu0 0.0
    %1427 = vmatpush1.msra.mxu0 0.0
    %1428 = vmatprep.subr.mxu0 0.0
    %1429 = vmatpush1.msra.mxu0 0.0
    %1430 = vmatprep.subr.mxu0 0.0
    %1431 = vmatpush1.msra.mxu0 0.0
    %1432 = vmatprep.subr.mxu0 0.0
    %1433 = vmatpush1.msra.mxu0 0.0
    %1434 = vmatprep.subr.mxu0 0.0
    %1435 = vmatpush1.msra.mxu0 0.0
    %1436 = vmatprep.subr.mxu0 0.0
    %1437 = vmatpush1.msra.mxu0 0.0
    %1438 = vmatprep.subr.mxu0 0.0
    %1439 = vmatpush1.msra.mxu0 0.0
    %1440 = vmatprep.mubr.f32.mxu0 0.0
    %1441 = vmatmul.mubr.f32.gmra.mrb[0].mxu0 %v1176
    %v1442 = vpop.f32.mrb[0].mxu0
    %v1443 = vadd.f32 %v1368, %v1442
    %v1444 = vpop.f32.mrb[0].mxu0
    %1445 = vmatprep.mubr.f32.mxu0 0.0
    %1446 = vmatmul.mubr.f32.gmra.mrb[0].mxu0 %v1181
    %v1447 = vpop.f32.mrb[0].mxu0
    %v1448 = vadd.f32 %v1373, %v1447
    %v1449 = vpop.f32.mrb[0].mxu0
    %1450 = vdwg.mxu0
    %v1451 = vld [vmem:[%s17] sm:$0x1]
    %v1453 = vlaneseq
    %v1454 = vshrl.u32 %v1453, 7
    %v1455 = vsub.s32 0, %v1454
    %v1456 = vrot.slane %v1451, %v1455
    %v1458 = vadd.f32 %v1443, %v1456
    %v1459 = vadd.f32 %v1448, %v1456
    %v1460 = vmax.f32 %v1458, 0.0
    %v1461 = vmax.f32 %v1459, 0.0
    %v1462 = vld [vmem:[#allocation14] sm:$0xff]
    %v1463 = vld [vmem:[#allocation14 + $0x8] sm:$0xff]
    %v1464 = vld [vmem:[#allocation14 + $0x10] sm:$0xff]
    %v1465 = vld [vmem:[#allocation14 + $0x18] sm:$0xff]
    %v1466 = vld [vmem:[#allocation14 + $0x20] sm:$0xff]
    %v1467 = vld [vmem:[#allocation14 + $0x28] sm:$0xff]
    %v1468 = vld [vmem:[#allocation14 + $0x30] sm:$0xff]
    %v1469 = vld [vmem:[#allocation14 + $0x38] sm:$0xff]
    %v1470 = vld [vmem:[#allocation14 + $0x40] sm:$0xff]
    %v1471 = vld [vmem:[#allocation14 + $0x48] sm:$0xff]
    %v1472 = vld [vmem:[#allocation14 + $0x50] sm:$0xff]
    %v1473 = vld [vmem:[#allocation14 + $0x58] sm:$0xff]
    %v1474 = vld [vmem:[#allocation14 + $0x60] sm:$0xff]
    %v1475 = vld [vmem:[#allocation14 + $0x68] sm:$0xff]
    %v1476 = vld [vmem:[#allocation14 + $0x70] sm:$0xff]
    %v1477 = vld [vmem:[#allocation14 + $0x78] sm:$0xff]
    %v1478 = vld [vmem:[%s19] sm:$0x1]
    %v1480 = vlaneseq
    %v1481 = vshrl.u32 %v1480, 7
    %v1482 = vsub.s32 0, %v1481
    %v1483 = vrot.slane %v1478, %v1482
    %1485 = vmatprep.subr.mxu0 0.0
    %1486 = vmatpush1.msra.mxu0 %v1462
    %1487 = vmatprep.subr.mxu0 0.0
    %1488 = vmatpush1.msra.mxu0 %v1463
    %1489 = vmatprep.subr.mxu0 0.0
    %1490 = vmatpush1.msra.mxu0 %v1464
    %1491 = vmatprep.subr.mxu0 0.0
    %1492 = vmatpush1.msra.mxu0 %v1465
    %1493 = vmatprep.subr.mxu0 0.0
    %1494 = vmatpush1.msra.mxu0 %v1466
    %1495 = vmatprep.subr.mxu0 0.0
    %1496 = vmatpush1.msra.mxu0 %v1467
    %1497 = vmatprep.subr.mxu0 0.0
    %1498 = vmatpush1.msra.mxu0 %v1468
    %1499 = vmatprep.subr.mxu0 0.0
    %1500 = vmatpush1.msra.mxu0 %v1469
    %1501 = vmatprep.subr.mxu0 0.0
    %1502 = vmatpush1.msra.mxu0 %v1470
    %1503 = vmatprep.subr.mxu0 0.0
    %1504 = vmatpush1.msra.mxu0 %v1471
    %1505 = vmatprep.subr.mxu0 0.0
    %1506 = vmatpush1.msra.mxu0 %v1472
    %1507 = vmatprep.subr.mxu0 0.0
    %1508 = vmatpush1.msra.mxu0 %v1473
    %1509 = vmatprep.subr.mxu0 0.0
    %1510 = vmatpush1.msra.mxu0 %v1474
    %1511 = vmatprep.subr.mxu0 0.0
    %1512 = vmatpush1.msra.mxu0 %v1475
    %1513 = vmatprep.subr.mxu0 0.0
    %1514 = vmatpush1.msra.mxu0 %v1476
    %1515 = vmatprep.subr.mxu0 0.0
    %1516 = vmatpush1.msra.mxu0 %v1477
    %1517 = vmatprep.subr.mxu0 0.0
    %1518 = vmatpush1.msra.mxu0 0.0
    %1519 = vmatprep.subr.mxu0 0.0
    %1520 = vmatpush1.msra.mxu0 0.0
    %1521 = vmatprep.subr.mxu0 0.0
    %1522 = vmatpush1.msra.mxu0 0.0
    %1523 = vmatprep.subr.mxu0 0.0
    %1524 = vmatpush1.msra.mxu0 0.0
    %1525 = vmatprep.subr.mxu0 0.0
    %1526 = vmatpush1.msra.mxu0 0.0
    %1527 = vmatprep.subr.mxu0 0.0
    %1528 = vmatpush1.msra.mxu0 0.0
    %1529 = vmatprep.subr.mxu0 0.0
    %1530 = vmatpush1.msra.mxu0 0.0
    %1531 = vmatprep.subr.mxu0 0.0
    %1532 = vmatpush1.msra.mxu0 0.0
    %1533 = vmatprep.subr.mxu0 0.0
    %1534 = vmatpush1.msra.mxu0 0.0
    %1535 = vmatprep.subr.mxu0 0.0
    %1536 = vmatpush1.msra.mxu0 0.0
    %1537 = vmatprep.subr.mxu0 0.0
    %1538 = vmatpush1.msra.mxu0 0.0
    %1539 = vmatprep.subr.mxu0 0.0
    %1540 = vmatpush1.msra.mxu0 0.0
    %1541 = vmatprep.subr.mxu0 0.0
    %1542 = vmatpush1.msra.mxu0 0.0
    %1543 = vmatprep.subr.mxu0 0.0
    %1544 = vmatpush1.msra.mxu0 0.0
    %1545 = vmatprep.subr.mxu0 0.0
    %1546 = vmatpush1.msra.mxu0 0.0
    %1547 = vmatprep.subr.mxu0 0.0
    %1548 = vmatpush1.msra.mxu0 0.0
    %1549 = vmatprep.mubr.f32.mxu0 0.0
    %1550 = vmatmul.mubr.f32.gmra.mrb[0].mxu0 %v1460
    %v1551 = vpop.f32.mrb[0].mxu0
    %v1552 = vadd.f32 %v1483, %v1551
    %v1553 = vpop.f32.mrb[0].mxu0
    %1554 = vmatprep.mubr.f32.mxu0 0.0
    %1555 = vmatmul.mubr.f32.gmra.mrb[0].mxu0 %v1461
    %v1556 = vpop.f32.mrb[0].mxu0
    %v1557 = vadd.f32 %v1483, %v1556
    %v1558 = vpop.f32.mrb[0].mxu0
    %1559 = vdwg.mxu0
    %1560 = vst [vmem:[#allocation16] sm:$0xff] %v1552
    %1561 = vst [vmem:[#allocation16 + $0x8] sm:$0xff] %v1557
    // Predicated region
    $region114: #{tpu_custom_call.1} parent=1 // pred_check
      _
    $region115: #{tpu_custom_call.1} parent=1 // pred_check_branch
      %1563 = sbr.rel (0) target = $region117
    $region116: #{tpu_custom_call.1} parent=1 // pred_region
      %s1565 = ssub.s32 256, 256
      %1566 = vsyncadd [#allocation4], %s1565
      %s1567 = sshll.u32 [#allocation16], 4
      %s1568 = int_to_ptr.vmem [resolvable:$true] %s1567
      %1573 = dma.vmem_to_hbm [thread:$0]  %s1568, 256, %s20, [#allocation4], 128, 128, 8
    $region117: #{tpu_custom_call.1} parent=1 // pred_fallthru
      _
    // Predicated region
    $region118: #{tpu_custom_call.1} parent=1 // pred_check
      _
    $region119: #{tpu_custom_call.1} parent=1 // pred_check_branch
      %1575 = sbr.rel (0) target = $region121
    $region120: #{tpu_custom_call.1} parent=1 // pred_region
      %1576 = dma.done [#allocation4], 256
    $region121: #{tpu_custom_call.1} parent=1 // pred_fallthru
      _
    %1577 = vsyncpa [#allocation3], 1
    %1578 = vsyncpa [#allocation6], 1
    %1579 = vsyncpa [#allocation9], 1
    %1580 = vsyncpa [#allocation12], 1
    %1581 = vsyncpa [#allocation15], 1
    %1582 = vsyncpa [#allocation4], 1

</llo_original>
